<compile_context>
chip_gen: v7x
topology: tpu7x:2x2x1
jax: 0.10.0
libtpu: 0.0.40
codegen_flags: <defaults>
</compile_context>

<pallas_src>
import jax
import jax.numpy as jnp
from jax.experimental import pallas as pl
from jax.experimental.pallas import tpu as pltpu
import numpy as np

# ---------------- problem sizes ----------------
VOCAB = 32      # len(tokens)
HIDDEN = 32     # n_hidden
LAYERS = 2      # n_layers (fixed at 2 in this kernel)
BATCH = 2
SEQ = 8
DTYPE = jnp.float32


# ---------------- Pallas kernel ----------------
def char_rnn_kernel(x_ref, h0_ref, c0_ref,
                    w0x_ref, w0h_ref, b0_ref,
                    w1_ref, b1_ref,
                    fcw_ref, fcb_ref,
                    out_ref, hn_ref, cn_ref):
    """Full-sequence 2-layer LSTM + output projection (single invocation, all VMEM).

    x_ref   : (T*Bp, V)   time-major flattened one-hot inputs
    h0/c0   : (L, Bp, H)  initial state
    w0x     : (V, 4H)     layer-0 input weights (pre-transposed)
    w0h     : (H, 4H)     layer-0 recurrent weights (pre-transposed)
    b0      : (1, 4H)     layer-0 bias (b_ih + b_hh)
    w1      : (2H, 4H)    layer-1 fused [input; recurrent] weights (pre-transposed)
    b1      : (1, 4H)     layer-1 bias (b_ih + b_hh)
    fcw     : (H, V)      fc weights (pre-transposed), fcb: (1, V)
    out_ref : (T*Bp, V)   logits, time-major flattened
    hn/cn   : (L, Bp, H)  final state
    Gate order matches PyTorch: [i, f, g, o].
    """
    Bp = h0_ref.shape[1]
    H = h0_ref.shape[2]
    TB = x_ref.shape[0]
    T = TB // Bp

    # --- register-resident recurrent state ---
    h0 = h0_ref[0].astype(jnp.float32)
    c0 = c0_ref[0].astype(jnp.float32)
    h1 = h0_ref[1].astype(jnp.float32)
    c1 = c0_ref[1].astype(jnp.float32)

    w0h = w0h_ref[...]
    w1 = w1_ref[...]
    b1 = jnp.broadcast_to(b1_ref[...], (Bp, 4 * H))   # hoisted broadcast

    # --- hoisted layer-0 input projection (+ bias) for all timesteps at once ---
    gates_x0 = (jnp.dot(x_ref[...].astype(jnp.float32), w0x_ref[...],
                        preferred_element_type=jnp.float32)
                + b0_ref[...])                         # (T*Bp, 4H)

    def gate_split(gates):
        sg = jax.nn.sigmoid(gates)                     # one EUP slab pass
        th = jnp.tanh(gates)                           # one EUP slab pass
        i = sg[:, 0:H]
        f = sg[:, H:2 * H]
        g = th[:, 2 * H:3 * H]
        o = sg[:, 3 * H:4 * H]
        return i, f, g, o

    h1_outs = []
    for t in range(T):                                 # static -> fully unrolled
        # layer 0: recurrent matmul only (input part precomputed)
        g0 = gates_x0[t * Bp:(t + 1) * Bp, :] + jnp.dot(
            h0, w0h, preferred_element_type=jnp.float32)
        i0, f0, gg0, o0 = gate_split(g0)
        c0 = f0 * c0 + i0 * gg0
        h0 = o0 * jnp.tanh(c0)

        # inter-layer dropout: eval mode -> identity
        # layer 1: fused [input; recurrent] matmul
        xh = jnp.concatenate([h0, h1], axis=1)         # (Bp, 2H)
        g1 = jnp.dot(xh, w1, preferred_element_type=jnp.float32) + b1
        i1, f1, gg1, o1 = gate_split(g1)
        c1 = f1 * c1 + i1 * gg1
        h1 = o1 * jnp.tanh(c1)
        h1_outs.append(h1)

    # --- hoisted FC projection + single bulk output store ---
    r = jnp.concatenate(h1_outs, axis=0)               # (T*Bp, H)
    logits = jnp.dot(r, fcw_ref[...], preferred_element_type=jnp.float32) + fcb_ref[...]
    out_ref[...] = logits.astype(out_ref.dtype)

    # --- final state written once ---
    hn_ref[0] = h0.astype(hn_ref.dtype)
    hn_ref[1] = h1.astype(hn_ref.dtype)
    cn_ref[0] = c0.astype(cn_ref.dtype)
    cn_ref[1] = c1.astype(cn_ref.dtype)


# ---------------- wrapper ----------------
def char_rnn_forward(x, hidden, params):
    """x: (B, T, V) batch_first; hidden = (h0, c0) each (L, B, H).
    Returns (out, (hn, cn)) with out shaped (B*T, V) — matching the PyTorch module."""
    h0, c0 = hidden
    B, T, V = x.shape
    L, _, H = h0.shape
    (wih0, whh0, bih0, bhh0, wih1, whh1, bih1, bhh1, fcw, fcb) = params

    # pad batch up to a multiple of 8 sublanes (free on TPU, sliced off afterwards)
    Bp = ((B + 7) // 8) * 8
    pad = Bp - B
    x_p = jnp.pad(x, ((0, pad), (0, 0), (0, 0)))
    h0_p = jnp.pad(h0, ((0, 0), (0, pad), (0, 0)))
    c0_p = jnp.pad(c0, ((0, 0), (0, pad), (0, 0)))

    # time-major flattened input: row t*Bp + b  <->  (time t, batch b)
    x_flat = jnp.transpose(x_p, (1, 0, 2)).reshape(T * Bp, V)

    b0 = (bih0 + bhh0)[None, :]                        # (1, 4H)
    b1 = (bih1 + bhh1)[None, :]
    w1 = jnp.concatenate([wih1.T, whh1.T], axis=0)     # (2H, 4H) fused layer-1 weights

    args = (x_flat, h0_p, c0_p,
            wih0.T, whh0.T, b0,
            w1, b1,
            fcw.T, fcb[None, :])

    vspec = pl.BlockSpec(memory_space=pltpu.MemorySpace.VMEM)
    out_flat, hn_p, cn_p = pl.pallas_call(
        char_rnn_kernel,
        out_shape=(jax.ShapeDtypeStruct((T * Bp, V), x.dtype),
                   jax.ShapeDtypeStruct((L, Bp, H), h0.dtype),
                   jax.ShapeDtypeStruct((L, Bp, H), c0.dtype)),
        in_specs=[vspec] * len(args),
        out_specs=(vspec, vspec, vspec),
    )(*args)

    out = (out_flat.reshape(T, Bp, V)[:, :B]           # drop padded batch rows
           .transpose(1, 0, 2)                         # back to batch_first
           .reshape(B * T, V))                         # PyTorch .view(-1, H) ordering
    return out, (hn_p[:, :B], cn_p[:, :B])


# ---------------- pure-JAX reference (PyTorch semantics, eval mode) ----------------
def ref_forward(x, hidden, params):
    (wih0, whh0, bih0, bhh0, wih1, whh1, bih1, bhh1, fcw, fcb) = params
    h0, c0 = hidden
    B, T, V = x.shape
    H = h0.shape[-1]

    def cell(inp, h, c, wih, whh, bih, bhh):
        g = inp @ wih.T + bih + h @ whh.T + bhh
        i = jax.nn.sigmoid(g[:, :H])
        f = jax.nn.sigmoid(g[:, H:2 * H])
        gg = jnp.tanh(g[:, 2 * H:3 * H])
        o = jax.nn.sigmoid(g[:, 3 * H:])
        cn = f * c + i * gg
        hn = o * jnp.tanh(cn)
        return hn, cn

    h = [h0[0], h0[1]]
    c = [c0[0], c0[1]]
    outs = []
    for t in range(T):
        xt = x[:, t, :]
        h[0], c[0] = cell(xt, h[0], c[0], wih0, whh0, bih0, bhh0)
        h[1], c[1] = cell(h[0], h[1], c[1], wih1, whh1, bih1, bhh1)
        outs.append(h[1])
    r = jnp.stack(outs, axis=1)                        # (B, T, H)
    out = r.reshape(-1, H) @ fcw.T + fcb               # (B*T, V)
    return out, (jnp.stack(h), jnp.stack(c))


# ---------------- parameter init (deterministic, PyTorch-style uniform) ----------------
def init_params(key, vocab, hidden):
    scale = 1.0 / np.sqrt(hidden)
    ks = jax.random.split(key, 10)
    u = lambda k, shp: jax.random.uniform(k, shp, DTYPE, -scale, scale)
    wih0 = u(ks[0], (4 * hidden, vocab))
    whh0 = u(ks[1], (4 * hidden, hidden))
    bih0 = u(ks[2], (4 * hidden,))
    bhh0 = u(ks[3], (4 * hidden,))
    wih1 = u(ks[4], (4 * hidden, hidden))
    whh1 = u(ks[5], (4 * hidden, hidden))
    bih1 = u(ks[6], (4 * hidden,))
    bhh1 = u(ks[7], (4 * hidden,))
    fcw = u(ks[8], (vocab, hidden))
    fcb = u(ks[9], (vocab,))
    return (wih0, whh0, bih0, bhh0, wih1, whh1, bih1, bhh1, fcw, fcb)


if __name__ == "__main__":
    key = jax.random.PRNGKey(0)
    kp, kx = jax.random.split(key)

    params = init_params(kp, VOCAB, HIDDEN)

    # one-hot char inputs, batch_first (B, T, V) as in the PyTorch module
    ids = jax.random.randint(kx, (BATCH, SEQ), 0, VOCAB)
    x = jax.nn.one_hot(ids, VOCAB, dtype=DTYPE)

    # init_hidden: zeros (n_layers, batch, n_hidden)
    h0 = jnp.zeros((LAYERS, BATCH, HIDDEN), DTYPE)
    c0 = jnp.zeros((LAYERS, BATCH, HIDDEN), DTYPE)

    out, (hn, cn) = char_rnn_forward(x, (h0, c0), params)
    jax.block_until_ready(out)
    jax.block_until_ready(hn)
    jax.block_until_ready(cn)

    # correctness check against pure-JAX reference
    out_ref, (hn_ref, cn_ref) = ref_forward(x, (h0, c0), params)
    np.testing.assert_allclose(np.asarray(out), np.asarray(out_ref), rtol=1e-5, atol=1e-5)
    np.testing.assert_allclose(np.asarray(hn), np.asarray(hn_ref), rtol=1e-5, atol=1e-5)
    np.testing.assert_allclose(np.asarray(cn), np.asarray(cn_ref), rtol=1e-5, atol=1e-5)

    assert out.shape == (BATCH * SEQ, VOCAB)
    assert hn.shape == (LAYERS, BATCH, HIDDEN) and cn.shape == (LAYERS, BATCH, HIDDEN)
    print("KERNEL_OK")
</pallas_src>

<mosaic_0001>
module attributes {stable_mosaic.version = 11 : i64} {
  func.func @char_rnn_kernel(%arg0: memref<64x32xf32, #tpu.memory_space<vmem>>, %arg1: memref<2x8x32xf32, #tpu.memory_space<vmem>>, %arg2: memref<2x8x32xf32, #tpu.memory_space<vmem>>, %arg3: memref<32x128xf32, #tpu.memory_space<vmem>>, %arg4: memref<32x128xf32, #tpu.memory_space<vmem>>, %arg5: memref<1x128xf32, #tpu.memory_space<vmem>>, %arg6: memref<64x128xf32, #tpu.memory_space<vmem>>, %arg7: memref<1x128xf32, #tpu.memory_space<vmem>>, %arg8: memref<32x32xf32, #tpu.memory_space<vmem>>, %arg9: memref<1x32xf32, #tpu.memory_space<vmem>>, %arg10: memref<64x32xf32, #tpu.memory_space<vmem>>, %arg11: memref<2x8x32xf32, #tpu.memory_space<vmem>>, %arg12: memref<2x8x32xf32, #tpu.memory_space<vmem>>) attributes {dimension_semantics = [], scalar_prefetch = 0 : i64, scratch_operands = 0 : i64, tpu.core_type = #tpu.core_type<tc>} {
    %c0 = arith.constant 0 : index
    %c0_0 = arith.constant 0 : index
    %c0_1 = arith.constant 0 : index
    %0 = vector.load %arg1[%c0, %c0_0, %c0_1] : memref<2x8x32xf32, #tpu.memory_space<vmem>>, vector<1x8x32xf32>
    %1 = vector.shape_cast %0 : vector<1x8x32xf32> to vector<8x32xf32>
    %c0_2 = arith.constant 0 : index
    %c0_3 = arith.constant 0 : index
    %c0_4 = arith.constant 0 : index
    %2 = vector.load %arg2[%c0_2, %c0_3, %c0_4] : memref<2x8x32xf32, #tpu.memory_space<vmem>>, vector<1x8x32xf32>
    %3 = vector.shape_cast %2 : vector<1x8x32xf32> to vector<8x32xf32>
    %c1 = arith.constant 1 : index
    %c0_5 = arith.constant 0 : index
    %c0_6 = arith.constant 0 : index
    %4 = vector.load %arg1[%c1, %c0_5, %c0_6] : memref<2x8x32xf32, #tpu.memory_space<vmem>>, vector<1x8x32xf32>
    %5 = vector.shape_cast %4 : vector<1x8x32xf32> to vector<8x32xf32>
    %c1_7 = arith.constant 1 : index
    %c0_8 = arith.constant 0 : index
    %c0_9 = arith.constant 0 : index
    %6 = vector.load %arg2[%c1_7, %c0_8, %c0_9] : memref<2x8x32xf32, #tpu.memory_space<vmem>>, vector<1x8x32xf32>
    %7 = vector.shape_cast %6 : vector<1x8x32xf32> to vector<8x32xf32>
    %c0_10 = arith.constant 0 : index
    %c0_11 = arith.constant 0 : index
    %8 = vector.load %arg4[%c0_10, %c0_11] : memref<32x128xf32, #tpu.memory_space<vmem>>, vector<32x128xf32>
    %c0_12 = arith.constant 0 : index
    %c0_13 = arith.constant 0 : index
    %9 = vector.load %arg6[%c0_12, %c0_13] : memref<64x128xf32, #tpu.memory_space<vmem>>, vector<64x128xf32>
    %c0_14 = arith.constant 0 : index
    %c0_15 = arith.constant 0 : index
    %10 = vector.load %arg7[%c0_14, %c0_15] : memref<1x128xf32, #tpu.memory_space<vmem>>, vector<1x128xf32>
    %11 = vector.shape_cast %10 : vector<1x128xf32> to vector<1x128xf32>
    %12 = vector.broadcast %11 : vector<1x128xf32> to vector<8x128xf32>
    %c0_16 = arith.constant 0 : index
    %c0_17 = arith.constant 0 : index
    %13 = vector.load %arg0[%c0_16, %c0_17] : memref<64x32xf32, #tpu.memory_space<vmem>>, vector<64x32xf32>
    %c0_18 = arith.constant 0 : index
    %c0_19 = arith.constant 0 : index
    %14 = vector.load %arg3[%c0_18, %c0_19] : memref<32x128xf32, #tpu.memory_space<vmem>>, vector<32x128xf32>
    %cst = arith.constant dense<0.000000e+00> : vector<64x128xf32>
    %15 = tpu.matmul %13, %14, %cst {dimension_numbers = #tpu.dot_dimension_numbers<[1], [0], [0], [1], [0, 0, 1, 1], [], []>} : vector<64x32xf32>, vector<32x128xf32>, vector<64x128xf32> -> vector<64x128xf32>
    %c0_20 = arith.constant 0 : index
    %c0_21 = arith.constant 0 : index
    %16 = vector.load %arg5[%c0_20, %c0_21] : memref<1x128xf32, #tpu.memory_space<vmem>>, vector<1x128xf32>
    %17 = vector.broadcast %16 : vector<1x128xf32> to vector<64x128xf32>
    %18 = arith.addf %15, %17 : vector<64x128xf32>
    %19 = vector.extract_strided_slice %18 {offsets = [0, 0], sizes = [8, 128], strides = [1, 1]} : vector<64x128xf32> to vector<8x128xf32>
    %cst_22 = arith.constant dense<0.000000e+00> : vector<8x128xf32>
    %20 = tpu.matmul %1, %8, %cst_22 {dimension_numbers = #tpu.dot_dimension_numbers<[1], [0], [0], [1], [0, 0, 1, 1], [], []>} : vector<8x32xf32>, vector<32x128xf32>, vector<8x128xf32> -> vector<8x128xf32>
    %21 = arith.addf %19, %20 : vector<8x128xf32>
    %22 = arith.negf %21 : vector<8x128xf32>
    %23 = math.exp %22 : vector<8x128xf32>
    %cst_23 = arith.constant 1.000000e+00 : f32
    %24 = vector.broadcast %cst_23 : f32 to vector<8x128xf32>
    %25 = arith.addf %24, %23 : vector<8x128xf32>
    %26 = arith.divf %24, %25 : vector<8x128xf32>
    %27 = math.tanh %21 : vector<8x128xf32>
    %28 = vector.extract_strided_slice %26 {offsets = [0, 0], sizes = [8, 32], strides = [1, 1]} : vector<8x128xf32> to vector<8x32xf32>
    %29 = vector.extract_strided_slice %26 {offsets = [0, 32], sizes = [8, 32], strides = [1, 1]} : vector<8x128xf32> to vector<8x32xf32>
    %30 = vector.extract_strided_slice %27 {offsets = [0, 64], sizes = [8, 32], strides = [1, 1]} : vector<8x128xf32> to vector<8x32xf32>
    %31 = vector.extract_strided_slice %26 {offsets = [0, 96], sizes = [8, 32], strides = [1, 1]} : vector<8x128xf32> to vector<8x32xf32>
    %32 = arith.mulf %29, %3 : vector<8x32xf32>
    %33 = arith.mulf %28, %30 : vector<8x32xf32>
    %34 = arith.addf %32, %33 : vector<8x32xf32>
    %35 = math.tanh %34 : vector<8x32xf32>
    %36 = arith.mulf %31, %35 : vector<8x32xf32>
    %37 = tpu.concatenate %36, %5 in 1 : vector<8x32xf32>, vector<8x32xf32> -> vector<8x64xf32>
    %cst_24 = arith.constant dense<0.000000e+00> : vector<8x128xf32>
    %38 = tpu.matmul %37, %9, %cst_24 {dimension_numbers = #tpu.dot_dimension_numbers<[1], [0], [0], [1], [0, 0, 1, 1], [], []>} : vector<8x64xf32>, vector<64x128xf32>, vector<8x128xf32> -> vector<8x128xf32>
    %39 = arith.addf %38, %12 : vector<8x128xf32>
    %40 = arith.negf %39 : vector<8x128xf32>
    %41 = math.exp %40 : vector<8x128xf32>
    %cst_25 = arith.constant 1.000000e+00 : f32
    %42 = vector.broadcast %cst_25 : f32 to vector<8x128xf32>
    %43 = arith.addf %42, %41 : vector<8x128xf32>
    %44 = arith.divf %42, %43 : vector<8x128xf32>
    %45 = math.tanh %39 : vector<8x128xf32>
    %46 = vector.extract_strided_slice %44 {offsets = [0, 0], sizes = [8, 32], strides = [1, 1]} : vector<8x128xf32> to vector<8x32xf32>
    %47 = vector.extract_strided_slice %44 {offsets = [0, 32], sizes = [8, 32], strides = [1, 1]} : vector<8x128xf32> to vector<8x32xf32>
    %48 = vector.extract_strided_slice %45 {offsets = [0, 64], sizes = [8, 32], strides = [1, 1]} : vector<8x128xf32> to vector<8x32xf32>
    %49 = vector.extract_strided_slice %44 {offsets = [0, 96], sizes = [8, 32], strides = [1, 1]} : vector<8x128xf32> to vector<8x32xf32>
    %50 = arith.mulf %47, %7 : vector<8x32xf32>
    %51 = arith.mulf %46, %48 : vector<8x32xf32>
    %52 = arith.addf %50, %51 : vector<8x32xf32>
    %53 = math.tanh %52 : vector<8x32xf32>
    %54 = arith.mulf %49, %53 : vector<8x32xf32>
    %55 = vector.extract_strided_slice %18 {offsets = [8, 0], sizes = [8, 128], strides = [1, 1]} : vector<64x128xf32> to vector<8x128xf32>
    %cst_26 = arith.constant dense<0.000000e+00> : vector<8x128xf32>
    %56 = tpu.matmul %36, %8, %cst_26 {dimension_numbers = #tpu.dot_dimension_numbers<[1], [0], [0], [1], [0, 0, 1, 1], [], []>} : vector<8x32xf32>, vector<32x128xf32>, vector<8x128xf32> -> vector<8x128xf32>
    %57 = arith.addf %55, %56 : vector<8x128xf32>
    %58 = arith.negf %57 : vector<8x128xf32>
    %59 = math.exp %58 : vector<8x128xf32>
    %cst_27 = arith.constant 1.000000e+00 : f32
    %60 = vector.broadcast %cst_27 : f32 to vector<8x128xf32>
    %61 = arith.addf %60, %59 : vector<8x128xf32>
    %62 = arith.divf %60, %61 : vector<8x128xf32>
    %63 = math.tanh %57 : vector<8x128xf32>
    %64 = vector.extract_strided_slice %62 {offsets = [0, 0], sizes = [8, 32], strides = [1, 1]} : vector<8x128xf32> to vector<8x32xf32>
    %65 = vector.extract_strided_slice %62 {offsets = [0, 32], sizes = [8, 32], strides = [1, 1]} : vector<8x128xf32> to vector<8x32xf32>
    %66 = vector.extract_strided_slice %63 {offsets = [0, 64], sizes = [8, 32], strides = [1, 1]} : vector<8x128xf32> to vector<8x32xf32>
    %67 = vector.extract_strided_slice %62 {offsets = [0, 96], sizes = [8, 32], strides = [1, 1]} : vector<8x128xf32> to vector<8x32xf32>
    %68 = arith.mulf %65, %34 : vector<8x32xf32>
    %69 = arith.mulf %64, %66 : vector<8x32xf32>
    %70 = arith.addf %68, %69 : vector<8x32xf32>
    %71 = math.tanh %70 : vector<8x32xf32>
    %72 = arith.mulf %67, %71 : vector<8x32xf32>
    %73 = tpu.concatenate %72, %54 in 1 : vector<8x32xf32>, vector<8x32xf32> -> vector<8x64xf32>
    %cst_28 = arith.constant dense<0.000000e+00> : vector<8x128xf32>
    %74 = tpu.matmul %73, %9, %cst_28 {dimension_numbers = #tpu.dot_dimension_numbers<[1], [0], [0], [1], [0, 0, 1, 1], [], []>} : vector<8x64xf32>, vector<64x128xf32>, vector<8x128xf32> -> vector<8x128xf32>
    %75 = arith.addf %74, %12 : vector<8x128xf32>
    %76 = arith.negf %75 : vector<8x128xf32>
    %77 = math.exp %76 : vector<8x128xf32>
    %cst_29 = arith.constant 1.000000e+00 : f32
    %78 = vector.broadcast %cst_29 : f32 to vector<8x128xf32>
    %79 = arith.addf %78, %77 : vector<8x128xf32>
    %80 = arith.divf %78, %79 : vector<8x128xf32>
    %81 = math.tanh %75 : vector<8x128xf32>
    %82 = vector.extract_strided_slice %80 {offsets = [0, 0], sizes = [8, 32], strides = [1, 1]} : vector<8x128xf32> to vector<8x32xf32>
    %83 = vector.extract_strided_slice %80 {offsets = [0, 32], sizes = [8, 32], strides = [1, 1]} : vector<8x128xf32> to vector<8x32xf32>
    %84 = vector.extract_strided_slice %81 {offsets = [0, 64], sizes = [8, 32], strides = [1, 1]} : vector<8x128xf32> to vector<8x32xf32>
    %85 = vector.extract_strided_slice %80 {offsets = [0, 96], sizes = [8, 32], strides = [1, 1]} : vector<8x128xf32> to vector<8x32xf32>
    %86 = arith.mulf %83, %52 : vector<8x32xf32>
    %87 = arith.mulf %82, %84 : vector<8x32xf32>
    %88 = arith.addf %86, %87 : vector<8x32xf32>
    %89 = math.tanh %88 : vector<8x32xf32>
    %90 = arith.mulf %85, %89 : vector<8x32xf32>
    %91 = vector.extract_strided_slice %18 {offsets = [16, 0], sizes = [8, 128], strides = [1, 1]} : vector<64x128xf32> to vector<8x128xf32>
    %cst_30 = arith.constant dense<0.000000e+00> : vector<8x128xf32>
    %92 = tpu.matmul %72, %8, %cst_30 {dimension_numbers = #tpu.dot_dimension_numbers<[1], [0], [0], [1], [0, 0, 1, 1], [], []>} : vector<8x32xf32>, vector<32x128xf32>, vector<8x128xf32> -> vector<8x128xf32>
    %93 = arith.addf %91, %92 : vector<8x128xf32>
    %94 = arith.negf %93 : vector<8x128xf32>
    %95 = math.exp %94 : vector<8x128xf32>
    %cst_31 = arith.constant 1.000000e+00 : f32
    %96 = vector.broadcast %cst_31 : f32 to vector<8x128xf32>
    %97 = arith.addf %96, %95 : vector<8x128xf32>
    %98 = arith.divf %96, %97 : vector<8x128xf32>
    %99 = math.tanh %93 : vector<8x128xf32>
    %100 = vector.extract_strided_slice %98 {offsets = [0, 0], sizes = [8, 32], strides = [1, 1]} : vector<8x128xf32> to vector<8x32xf32>
    %101 = vector.extract_strided_slice %98 {offsets = [0, 32], sizes = [8, 32], strides = [1, 1]} : vector<8x128xf32> to vector<8x32xf32>
    %102 = vector.extract_strided_slice %99 {offsets = [0, 64], sizes = [8, 32], strides = [1, 1]} : vector<8x128xf32> to vector<8x32xf32>
    %103 = vector.extract_strided_slice %98 {offsets = [0, 96], sizes = [8, 32], strides = [1, 1]} : vector<8x128xf32> to vector<8x32xf32>
    %104 = arith.mulf %101, %70 : vector<8x32xf32>
    %105 = arith.mulf %100, %102 : vector<8x32xf32>
    %106 = arith.addf %104, %105 : vector<8x32xf32>
    %107 = math.tanh %106 : vector<8x32xf32>
    %108 = arith.mulf %103, %107 : vector<8x32xf32>
    %109 = tpu.concatenate %108, %90 in 1 : vector<8x32xf32>, vector<8x32xf32> -> vector<8x64xf32>
    %cst_32 = arith.constant dense<0.000000e+00> : vector<8x128xf32>
    %110 = tpu.matmul %109, %9, %cst_32 {dimension_numbers = #tpu.dot_dimension_numbers<[1], [0], [0], [1], [0, 0, 1, 1], [], []>} : vector<8x64xf32>, vector<64x128xf32>, vector<8x128xf32> -> vector<8x128xf32>
    %111 = arith.addf %110, %12 : vector<8x128xf32>
    %112 = arith.negf %111 : vector<8x128xf32>
    %113 = math.exp %112 : vector<8x128xf32>
    %cst_33 = arith.constant 1.000000e+00 : f32
    %114 = vector.broadcast %cst_33 : f32 to vector<8x128xf32>
    %115 = arith.addf %114, %113 : vector<8x128xf32>
    %116 = arith.divf %114, %115 : vector<8x128xf32>
    %117 = math.tanh %111 : vector<8x128xf32>
    %118 = vector.extract_strided_slice %116 {offsets = [0, 0], sizes = [8, 32], strides = [1, 1]} : vector<8x128xf32> to vector<8x32xf32>
    %119 = vector.extract_strided_slice %116 {offsets = [0, 32], sizes = [8, 32], strides = [1, 1]} : vector<8x128xf32> to vector<8x32xf32>
    %120 = vector.extract_strided_slice %117 {offsets = [0, 64], sizes = [8, 32], strides = [1, 1]} : vector<8x128xf32> to vector<8x32xf32>
    %121 = vector.extract_strided_slice %116 {offsets = [0, 96], sizes = [8, 32], strides = [1, 1]} : vector<8x128xf32> to vector<8x32xf32>
    %122 = arith.mulf %119, %88 : vector<8x32xf32>
    %123 = arith.mulf %118, %120 : vector<8x32xf32>
    %124 = arith.addf %122, %123 : vector<8x32xf32>
    %125 = math.tanh %124 : vector<8x32xf32>
    %126 = arith.mulf %121, %125 : vector<8x32xf32>
    %127 = vector.extract_strided_slice %18 {offsets = [24, 0], sizes = [8, 128], strides = [1, 1]} : vector<64x128xf32> to vector<8x128xf32>
    %cst_34 = arith.constant dense<0.000000e+00> : vector<8x128xf32>
    %128 = tpu.matmul %108, %8, %cst_34 {dimension_numbers = #tpu.dot_dimension_numbers<[1], [0], [0], [1], [0, 0, 1, 1], [], []>} : vector<8x32xf32>, vector<32x128xf32>, vector<8x128xf32> -> vector<8x128xf32>
    %129 = arith.addf %127, %128 : vector<8x128xf32>
    %130 = arith.negf %129 : vector<8x128xf32>
    %131 = math.exp %130 : vector<8x128xf32>
    %cst_35 = arith.constant 1.000000e+00 : f32
    %132 = vector.broadcast %cst_35 : f32 to vector<8x128xf32>
    %133 = arith.addf %132, %131 : vector<8x128xf32>
    %134 = arith.divf %132, %133 : vector<8x128xf32>
    %135 = math.tanh %129 : vector<8x128xf32>
    %136 = vector.extract_strided_slice %134 {offsets = [0, 0], sizes = [8, 32], strides = [1, 1]} : vector<8x128xf32> to vector<8x32xf32>
    %137 = vector.extract_strided_slice %134 {offsets = [0, 32], sizes = [8, 32], strides = [1, 1]} : vector<8x128xf32> to vector<8x32xf32>
    %138 = vector.extract_strided_slice %135 {offsets = [0, 64], sizes = [8, 32], strides = [1, 1]} : vector<8x128xf32> to vector<8x32xf32>
    %139 = vector.extract_strided_slice %134 {offsets = [0, 96], sizes = [8, 32], strides = [1, 1]} : vector<8x128xf32> to vector<8x32xf32>
    %140 = arith.mulf %137, %106 : vector<8x32xf32>
    %141 = arith.mulf %136, %138 : vector<8x32xf32>
    %142 = arith.addf %140, %141 : vector<8x32xf32>
    %143 = math.tanh %142 : vector<8x32xf32>
    %144 = arith.mulf %139, %143 : vector<8x32xf32>
    %145 = tpu.concatenate %144, %126 in 1 : vector<8x32xf32>, vector<8x32xf32> -> vector<8x64xf32>
    %cst_36 = arith.constant dense<0.000000e+00> : vector<8x128xf32>
    %146 = tpu.matmul %145, %9, %cst_36 {dimension_numbers = #tpu.dot_dimension_numbers<[1], [0], [0], [1], [0, 0, 1, 1], [], []>} : vector<8x64xf32>, vector<64x128xf32>, vector<8x128xf32> -> vector<8x128xf32>
    %147 = arith.addf %146, %12 : vector<8x128xf32>
    %148 = arith.negf %147 : vector<8x128xf32>
    %149 = math.exp %148 : vector<8x128xf32>
    %cst_37 = arith.constant 1.000000e+00 : f32
    %150 = vector.broadcast %cst_37 : f32 to vector<8x128xf32>
    %151 = arith.addf %150, %149 : vector<8x128xf32>
    %152 = arith.divf %150, %151 : vector<8x128xf32>
    %153 = math.tanh %147 : vector<8x128xf32>
    %154 = vector.extract_strided_slice %152 {offsets = [0, 0], sizes = [8, 32], strides = [1, 1]} : vector<8x128xf32> to vector<8x32xf32>
    %155 = vector.extract_strided_slice %152 {offsets = [0, 32], sizes = [8, 32], strides = [1, 1]} : vector<8x128xf32> to vector<8x32xf32>
    %156 = vector.extract_strided_slice %153 {offsets = [0, 64], sizes = [8, 32], strides = [1, 1]} : vector<8x128xf32> to vector<8x32xf32>
    %157 = vector.extract_strided_slice %152 {offsets = [0, 96], sizes = [8, 32], strides = [1, 1]} : vector<8x128xf32> to vector<8x32xf32>
    %158 = arith.mulf %155, %124 : vector<8x32xf32>
    %159 = arith.mulf %154, %156 : vector<8x32xf32>
    %160 = arith.addf %158, %159 : vector<8x32xf32>
    %161 = math.tanh %160 : vector<8x32xf32>
    %162 = arith.mulf %157, %161 : vector<8x32xf32>
    %163 = vector.extract_strided_slice %18 {offsets = [32, 0], sizes = [8, 128], strides = [1, 1]} : vector<64x128xf32> to vector<8x128xf32>
    %cst_38 = arith.constant dense<0.000000e+00> : vector<8x128xf32>
    %164 = tpu.matmul %144, %8, %cst_38 {dimension_numbers = #tpu.dot_dimension_numbers<[1], [0], [0], [1], [0, 0, 1, 1], [], []>} : vector<8x32xf32>, vector<32x128xf32>, vector<8x128xf32> -> vector<8x128xf32>
    %165 = arith.addf %163, %164 : vector<8x128xf32>
    %166 = arith.negf %165 : vector<8x128xf32>
    %167 = math.exp %166 : vector<8x128xf32>
    %cst_39 = arith.constant 1.000000e+00 : f32
    %168 = vector.broadcast %cst_39 : f32 to vector<8x128xf32>
    %169 = arith.addf %168, %167 : vector<8x128xf32>
    %170 = arith.divf %168, %169 : vector<8x128xf32>
    %171 = math.tanh %165 : vector<8x128xf32>
    %172 = vector.extract_strided_slice %170 {offsets = [0, 0], sizes = [8, 32], strides = [1, 1]} : vector<8x128xf32> to vector<8x32xf32>
    %173 = vector.extract_strided_slice %170 {offsets = [0, 32], sizes = [8, 32], strides = [1, 1]} : vector<8x128xf32> to vector<8x32xf32>
    %174 = vector.extract_strided_slice %171 {offsets = [0, 64], sizes = [8, 32], strides = [1, 1]} : vector<8x128xf32> to vector<8x32xf32>
    %175 = vector.extract_strided_slice %170 {offsets = [0, 96], sizes = [8, 32], strides = [1, 1]} : vector<8x128xf32> to vector<8x32xf32>
    %176 = arith.mulf %173, %142 : vector<8x32xf32>
    %177 = arith.mulf %172, %174 : vector<8x32xf32>
    %178 = arith.addf %176, %177 : vector<8x32xf32>
    %179 = math.tanh %178 : vector<8x32xf32>
    %180 = arith.mulf %175, %179 : vector<8x32xf32>
    %181 = tpu.concatenate %180, %162 in 1 : vector<8x32xf32>, vector<8x32xf32> -> vector<8x64xf32>
    %cst_40 = arith.constant dense<0.000000e+00> : vector<8x128xf32>
    %182 = tpu.matmul %181, %9, %cst_40 {dimension_numbers = #tpu.dot_dimension_numbers<[1], [0], [0], [1], [0, 0, 1, 1], [], []>} : vector<8x64xf32>, vector<64x128xf32>, vector<8x128xf32> -> vector<8x128xf32>
    %183 = arith.addf %182, %12 : vector<8x128xf32>
    %184 = arith.negf %183 : vector<8x128xf32>
    %185 = math.exp %184 : vector<8x128xf32>
    %cst_41 = arith.constant 1.000000e+00 : f32
    %186 = vector.broadcast %cst_41 : f32 to vector<8x128xf32>
    %187 = arith.addf %186, %185 : vector<8x128xf32>
    %188 = arith.divf %186, %187 : vector<8x128xf32>
    %189 = math.tanh %183 : vector<8x128xf32>
    %190 = vector.extract_strided_slice %188 {offsets = [0, 0], sizes = [8, 32], strides = [1, 1]} : vector<8x128xf32> to vector<8x32xf32>
    %191 = vector.extract_strided_slice %188 {offsets = [0, 32], sizes = [8, 32], strides = [1, 1]} : vector<8x128xf32> to vector<8x32xf32>
    %192 = vector.extract_strided_slice %189 {offsets = [0, 64], sizes = [8, 32], strides = [1, 1]} : vector<8x128xf32> to vector<8x32xf32>
    %193 = vector.extract_strided_slice %188 {offsets = [0, 96], sizes = [8, 32], strides = [1, 1]} : vector<8x128xf32> to vector<8x32xf32>
    %194 = arith.mulf %191, %160 : vector<8x32xf32>
    %195 = arith.mulf %190, %192 : vector<8x32xf32>
    %196 = arith.addf %194, %195 : vector<8x32xf32>
    %197 = math.tanh %196 : vector<8x32xf32>
    %198 = arith.mulf %193, %197 : vector<8x32xf32>
    %199 = vector.extract_strided_slice %18 {offsets = [40, 0], sizes = [8, 128], strides = [1, 1]} : vector<64x128xf32> to vector<8x128xf32>
    %cst_42 = arith.constant dense<0.000000e+00> : vector<8x128xf32>
    %200 = tpu.matmul %180, %8, %cst_42 {dimension_numbers = #tpu.dot_dimension_numbers<[1], [0], [0], [1], [0, 0, 1, 1], [], []>} : vector<8x32xf32>, vector<32x128xf32>, vector<8x128xf32> -> vector<8x128xf32>
    %201 = arith.addf %199, %200 : vector<8x128xf32>
    %202 = arith.negf %201 : vector<8x128xf32>
    %203 = math.exp %202 : vector<8x128xf32>
    %cst_43 = arith.constant 1.000000e+00 : f32
    %204 = vector.broadcast %cst_43 : f32 to vector<8x128xf32>
    %205 = arith.addf %204, %203 : vector<8x128xf32>
    %206 = arith.divf %204, %205 : vector<8x128xf32>
    %207 = math.tanh %201 : vector<8x128xf32>
    %208 = vector.extract_strided_slice %206 {offsets = [0, 0], sizes = [8, 32], strides = [1, 1]} : vector<8x128xf32> to vector<8x32xf32>
    %209 = vector.extract_strided_slice %206 {offsets = [0, 32], sizes = [8, 32], strides = [1, 1]} : vector<8x128xf32> to vector<8x32xf32>
    %210 = vector.extract_strided_slice %207 {offsets = [0, 64], sizes = [8, 32], strides = [1, 1]} : vector<8x128xf32> to vector<8x32xf32>
    %211 = vector.extract_strided_slice %206 {offsets = [0, 96], sizes = [8, 32], strides = [1, 1]} : vector<8x128xf32> to vector<8x32xf32>
    %212 = arith.mulf %209, %178 : vector<8x32xf32>
    %213 = arith.mulf %208, %210 : vector<8x32xf32>
    %214 = arith.addf %212, %213 : vector<8x32xf32>
    %215 = math.tanh %214 : vector<8x32xf32>
    %216 = arith.mulf %211, %215 : vector<8x32xf32>
    %217 = tpu.concatenate %216, %198 in 1 : vector<8x32xf32>, vector<8x32xf32> -> vector<8x64xf32>
    %cst_44 = arith.constant dense<0.000000e+00> : vector<8x128xf32>
    %218 = tpu.matmul %217, %9, %cst_44 {dimension_numbers = #tpu.dot_dimension_numbers<[1], [0], [0], [1], [0, 0, 1, 1], [], []>} : vector<8x64xf32>, vector<64x128xf32>, vector<8x128xf32> -> vector<8x128xf32>
    %219 = arith.addf %218, %12 : vector<8x128xf32>
    %220 = arith.negf %219 : vector<8x128xf32>
    %221 = math.exp %220 : vector<8x128xf32>
    %cst_45 = arith.constant 1.000000e+00 : f32
    %222 = vector.broadcast %cst_45 : f32 to vector<8x128xf32>
    %223 = arith.addf %222, %221 : vector<8x128xf32>
    %224 = arith.divf %222, %223 : vector<8x128xf32>
    %225 = math.tanh %219 : vector<8x128xf32>
    %226 = vector.extract_strided_slice %224 {offsets = [0, 0], sizes = [8, 32], strides = [1, 1]} : vector<8x128xf32> to vector<8x32xf32>
    %227 = vector.extract_strided_slice %224 {offsets = [0, 32], sizes = [8, 32], strides = [1, 1]} : vector<8x128xf32> to vector<8x32xf32>
    %228 = vector.extract_strided_slice %225 {offsets = [0, 64], sizes = [8, 32], strides = [1, 1]} : vector<8x128xf32> to vector<8x32xf32>
    %229 = vector.extract_strided_slice %224 {offsets = [0, 96], sizes = [8, 32], strides = [1, 1]} : vector<8x128xf32> to vector<8x32xf32>
    %230 = arith.mulf %227, %196 : vector<8x32xf32>
    %231 = arith.mulf %226, %228 : vector<8x32xf32>
    %232 = arith.addf %230, %231 : vector<8x32xf32>
    %233 = math.tanh %232 : vector<8x32xf32>
    %234 = arith.mulf %229, %233 : vector<8x32xf32>
    %235 = vector.extract_strided_slice %18 {offsets = [48, 0], sizes = [8, 128], strides = [1, 1]} : vector<64x128xf32> to vector<8x128xf32>
    %cst_46 = arith.constant dense<0.000000e+00> : vector<8x128xf32>
    %236 = tpu.matmul %216, %8, %cst_46 {dimension_numbers = #tpu.dot_dimension_numbers<[1], [0], [0], [1], [0, 0, 1, 1], [], []>} : vector<8x32xf32>, vector<32x128xf32>, vector<8x128xf32> -> vector<8x128xf32>
    %237 = arith.addf %235, %236 : vector<8x128xf32>
    %238 = arith.negf %237 : vector<8x128xf32>
    %239 = math.exp %238 : vector<8x128xf32>
    %cst_47 = arith.constant 1.000000e+00 : f32
    %240 = vector.broadcast %cst_47 : f32 to vector<8x128xf32>
    %241 = arith.addf %240, %239 : vector<8x128xf32>
    %242 = arith.divf %240, %241 : vector<8x128xf32>
    %243 = math.tanh %237 : vector<8x128xf32>
    %244 = vector.extract_strided_slice %242 {offsets = [0, 0], sizes = [8, 32], strides = [1, 1]} : vector<8x128xf32> to vector<8x32xf32>
    %245 = vector.extract_strided_slice %242 {offsets = [0, 32], sizes = [8, 32], strides = [1, 1]} : vector<8x128xf32> to vector<8x32xf32>
    %246 = vector.extract_strided_slice %243 {offsets = [0, 64], sizes = [8, 32], strides = [1, 1]} : vector<8x128xf32> to vector<8x32xf32>
    %247 = vector.extract_strided_slice %242 {offsets = [0, 96], sizes = [8, 32], strides = [1, 1]} : vector<8x128xf32> to vector<8x32xf32>
    %248 = arith.mulf %245, %214 : vector<8x32xf32>
    %249 = arith.mulf %244, %246 : vector<8x32xf32>
    %250 = arith.addf %248, %249 : vector<8x32xf32>
    %251 = math.tanh %250 : vector<8x32xf32>
    %252 = arith.mulf %247, %251 : vector<8x32xf32>
    %253 = tpu.concatenate %252, %234 in 1 : vector<8x32xf32>, vector<8x32xf32> -> vector<8x64xf32>
    %cst_48 = arith.constant dense<0.000000e+00> : vector<8x128xf32>
    %254 = tpu.matmul %253, %9, %cst_48 {dimension_numbers = #tpu.dot_dimension_numbers<[1], [0], [0], [1], [0, 0, 1, 1], [], []>} : vector<8x64xf32>, vector<64x128xf32>, vector<8x128xf32> -> vector<8x128xf32>
    %255 = arith.addf %254, %12 : vector<8x128xf32>
    %256 = arith.negf %255 : vector<8x128xf32>
    %257 = math.exp %256 : vector<8x128xf32>
    %cst_49 = arith.constant 1.000000e+00 : f32
    %258 = vector.broadcast %cst_49 : f32 to vector<8x128xf32>
    %259 = arith.addf %258, %257 : vector<8x128xf32>
    %260 = arith.divf %258, %259 : vector<8x128xf32>
    %261 = math.tanh %255 : vector<8x128xf32>
    %262 = vector.extract_strided_slice %260 {offsets = [0, 0], sizes = [8, 32], strides = [1, 1]} : vector<8x128xf32> to vector<8x32xf32>
    %263 = vector.extract_strided_slice %260 {offsets = [0, 32], sizes = [8, 32], strides = [1, 1]} : vector<8x128xf32> to vector<8x32xf32>
    %264 = vector.extract_strided_slice %261 {offsets = [0, 64], sizes = [8, 32], strides = [1, 1]} : vector<8x128xf32> to vector<8x32xf32>
    %265 = vector.extract_strided_slice %260 {offsets = [0, 96], sizes = [8, 32], strides = [1, 1]} : vector<8x128xf32> to vector<8x32xf32>
    %266 = arith.mulf %263, %232 : vector<8x32xf32>
    %267 = arith.mulf %262, %264 : vector<8x32xf32>
    %268 = arith.addf %266, %267 : vector<8x32xf32>
    %269 = math.tanh %268 : vector<8x32xf32>
    %270 = arith.mulf %265, %269 : vector<8x32xf32>
    %271 = vector.extract_strided_slice %18 {offsets = [56, 0], sizes = [8, 128], strides = [1, 1]} : vector<64x128xf32> to vector<8x128xf32>
    %cst_50 = arith.constant dense<0.000000e+00> : vector<8x128xf32>
    %272 = tpu.matmul %252, %8, %cst_50 {dimension_numbers = #tpu.dot_dimension_numbers<[1], [0], [0], [1], [0, 0, 1, 1], [], []>} : vector<8x32xf32>, vector<32x128xf32>, vector<8x128xf32> -> vector<8x128xf32>
    %273 = arith.addf %271, %272 : vector<8x128xf32>
    %274 = arith.negf %273 : vector<8x128xf32>
    %275 = math.exp %274 : vector<8x128xf32>
    %cst_51 = arith.constant 1.000000e+00 : f32
    %276 = vector.broadcast %cst_51 : f32 to vector<8x128xf32>
    %277 = arith.addf %276, %275 : vector<8x128xf32>
    %278 = arith.divf %276, %277 : vector<8x128xf32>
    %279 = math.tanh %273 : vector<8x128xf32>
    %280 = vector.extract_strided_slice %278 {offsets = [0, 0], sizes = [8, 32], strides = [1, 1]} : vector<8x128xf32> to vector<8x32xf32>
    %281 = vector.extract_strided_slice %278 {offsets = [0, 32], sizes = [8, 32], strides = [1, 1]} : vector<8x128xf32> to vector<8x32xf32>
    %282 = vector.extract_strided_slice %279 {offsets = [0, 64], sizes = [8, 32], strides = [1, 1]} : vector<8x128xf32> to vector<8x32xf32>
    %283 = vector.extract_strided_slice %278 {offsets = [0, 96], sizes = [8, 32], strides = [1, 1]} : vector<8x128xf32> to vector<8x32xf32>
    %284 = arith.mulf %281, %250 : vector<8x32xf32>
    %285 = arith.mulf %280, %282 : vector<8x32xf32>
    %286 = arith.addf %284, %285 : vector<8x32xf32>
    %287 = math.tanh %286 : vector<8x32xf32>
    %288 = arith.mulf %283, %287 : vector<8x32xf32>
    %289 = tpu.concatenate %288, %270 in 1 : vector<8x32xf32>, vector<8x32xf32> -> vector<8x64xf32>
    %cst_52 = arith.constant dense<0.000000e+00> : vector<8x128xf32>
    %290 = tpu.matmul %289, %9, %cst_52 {dimension_numbers = #tpu.dot_dimension_numbers<[1], [0], [0], [1], [0, 0, 1, 1], [], []>} : vector<8x64xf32>, vector<64x128xf32>, vector<8x128xf32> -> vector<8x128xf32>
    %291 = arith.addf %290, %12 : vector<8x128xf32>
    %292 = arith.negf %291 : vector<8x128xf32>
    %293 = math.exp %292 : vector<8x128xf32>
    %cst_53 = arith.constant 1.000000e+00 : f32
    %294 = vector.broadcast %cst_53 : f32 to vector<8x128xf32>
    %295 = arith.addf %294, %293 : vector<8x128xf32>
    %296 = arith.divf %294, %295 : vector<8x128xf32>
    %297 = math.tanh %291 : vector<8x128xf32>
    %298 = vector.extract_strided_slice %296 {offsets = [0, 0], sizes = [8, 32], strides = [1, 1]} : vector<8x128xf32> to vector<8x32xf32>
    %299 = vector.extract_strided_slice %296 {offsets = [0, 32], sizes = [8, 32], strides = [1, 1]} : vector<8x128xf32> to vector<8x32xf32>
    %300 = vector.extract_strided_slice %297 {offsets = [0, 64], sizes = [8, 32], strides = [1, 1]} : vector<8x128xf32> to vector<8x32xf32>
    %301 = vector.extract_strided_slice %296 {offsets = [0, 96], sizes = [8, 32], strides = [1, 1]} : vector<8x128xf32> to vector<8x32xf32>
    %302 = arith.mulf %299, %268 : vector<8x32xf32>
    %303 = arith.mulf %298, %300 : vector<8x32xf32>
    %304 = arith.addf %302, %303 : vector<8x32xf32>
    %305 = math.tanh %304 : vector<8x32xf32>
    %306 = arith.mulf %301, %305 : vector<8x32xf32>
    %307 = tpu.concatenate %54, %90, %126, %162, %198, %234, %270, %306 in 0 : vector<8x32xf32>, vector<8x32xf32>, vector<8x32xf32>, vector<8x32xf32>, vector<8x32xf32>, vector<8x32xf32>, vector<8x32xf32>, vector<8x32xf32> -> vector<64x32xf32>
    %c0_54 = arith.constant 0 : index
    %c0_55 = arith.constant 0 : index
    %308 = vector.load %arg8[%c0_54, %c0_55] : memref<32x32xf32, #tpu.memory_space<vmem>>, vector<32x32xf32>
    %cst_56 = arith.constant dense<0.000000e+00> : vector<64x32xf32>
    %309 = tpu.matmul %307, %308, %cst_56 {dimension_numbers = #tpu.dot_dimension_numbers<[1], [0], [0], [1], [0, 0, 1, 1], [], []>} : vector<64x32xf32>, vector<32x32xf32>, vector<64x32xf32> -> vector<64x32xf32>
    %c0_57 = arith.constant 0 : index
    %c0_58 = arith.constant 0 : index
    %310 = vector.load %arg9[%c0_57, %c0_58] : memref<1x32xf32, #tpu.memory_space<vmem>>, vector<1x32xf32>
    %311 = vector.broadcast %310 : vector<1x32xf32> to vector<64x32xf32>
    %312 = arith.addf %309, %311 : vector<64x32xf32>
    %c0_59 = arith.constant 0 : index
    %c0_60 = arith.constant 0 : index
    %313 = vector.load %arg10[%c0_59, %c0_60] : memref<64x32xf32, #tpu.memory_space<vmem>>, vector<64x32xf32>
    tpu.vector_store %arg10[%c0_59, %c0_60], %312 {strides = array<i32>} : memref<64x32xf32, #tpu.memory_space<vmem>>, vector<64x32xf32>,
    %c0_61 = arith.constant 0 : index
    %c0_62 = arith.constant 0 : index
    %c0_63 = arith.constant 0 : index
    %314 = vector.load %arg11[%c0_61, %c0_62, %c0_63] : memref<2x8x32xf32, #tpu.memory_space<vmem>>, vector<1x8x32xf32>
    %315 = vector.shape_cast %314 : vector<1x8x32xf32> to vector<8x32xf32>
    %316 = vector.shape_cast %288 : vector<8x32xf32> to vector<1x8x32xf32>
    tpu.vector_store %arg11[%c0_61, %c0_62, %c0_63], %316 {strides = array<i32>} : memref<2x8x32xf32, #tpu.memory_space<vmem>>, vector<1x8x32xf32>,
    %c1_64 = arith.constant 1 : index
    %c0_65 = arith.constant 0 : index
    %c0_66 = arith.constant 0 : index
    %317 = vector.load %arg11[%c1_64, %c0_65, %c0_66] : memref<2x8x32xf32, #tpu.memory_space<vmem>>, vector<1x8x32xf32>
    %318 = vector.shape_cast %317 : vector<1x8x32xf32> to vector<8x32xf32>
    %319 = vector.shape_cast %306 : vector<8x32xf32> to vector<1x8x32xf32>
    tpu.vector_store %arg11[%c1_64, %c0_65, %c0_66], %319 {strides = array<i32>} : memref<2x8x32xf32, #tpu.memory_space<vmem>>, vector<1x8x32xf32>,
    %c0_67 = arith.constant 0 : index
    %c0_68 = arith.constant 0 : index
    %c0_69 = arith.constant 0 : index
    %320 = vector.load %arg12[%c0_67, %c0_68, %c0_69] : memref<2x8x32xf32, #tpu.memory_space<vmem>>, vector<1x8x32xf32>
    %321 = vector.shape_cast %320 : vector<1x8x32xf32> to vector<8x32xf32>
    %322 = vector.shape_cast %286 : vector<8x32xf32> to vector<1x8x32xf32>
    tpu.vector_store %arg12[%c0_67, %c0_68, %c0_69], %322 {strides = array<i32>} : memref<2x8x32xf32, #tpu.memory_space<vmem>>, vector<1x8x32xf32>,
    %c1_70 = arith.constant 1 : index
    %c0_71 = arith.constant 0 : index
    %c0_72 = arith.constant 0 : index
    %323 = vector.load %arg12[%c1_70, %c0_71, %c0_72] : memref<2x8x32xf32, #tpu.memory_space<vmem>>, vector<1x8x32xf32>
    %324 = vector.shape_cast %323 : vector<1x8x32xf32> to vector<8x32xf32>
    %325 = vector.shape_cast %304 : vector<8x32xf32> to vector<1x8x32xf32>
    tpu.vector_store %arg12[%c1_70, %c0_71, %c0_72], %325 {strides = array<i32>} : memref<2x8x32xf32, #tpu.memory_space<vmem>>, vector<1x8x32xf32>,
    return
  }
}

</mosaic_0001>

<llo_original>
// kernel: tpu_custom_call.1
$region0: #{tpu_custom_call.1}
  #allocation0 [shape = 'u32[]', space=smem, size = 0x4, offset = 0x4, fixed_abs, tag = 'smem constant byte address 0x4 - core index']
  #allocation1 [shape = 'u32[144,128]{1,0:T(1,128)}', space=vmem, size = 0x12000, scoped, tag = 'internal scratch']
  %s0 = inlined_call_operand.vmem [shape: f32[64,32], index: 0, kind: input, shape index: {}]
  %s1 = inlined_call_operand.vmem [shape: f32[2,8,32], index: 1, kind: input, shape index: {}]
  %s2 = inlined_call_operand.hbm [shape: f32[2,8,32], index: 2, kind: input, shape index: {}]
  %s3 = inlined_call_operand.vmem [shape: f32[32,128], index: 3, kind: input, shape index: {}]
  %s4 = inlined_call_operand.hbm [shape: f32[32,128], index: 4, kind: input, shape index: {}]
  %s5 = inlined_call_operand.vmem [shape: f32[1,128], index: 5, kind: input, shape index: {}]
  %s6 = inlined_call_operand.vmem [shape: f32[64,128], index: 6, kind: input, shape index: {}]
  %s7 = inlined_call_operand.vmem [shape: f32[1,128], index: 7, kind: input, shape index: {}]
  %s8 = inlined_call_operand.hbm [shape: f32[32,32], index: 8, kind: input, shape index: {}]
  %s9 = inlined_call_operand.vmem [shape: f32[1,32], index: 9, kind: input, shape index: {}]
  %s10 = inlined_call_operand.vmem [shape: f32[64,32], index: 10, kind: output, shape index: {0}]
  %s11 = inlined_call_operand.hbm [shape: f32[2,8,32], index: 11, kind: output, shape index: {1}]
  %s12 = inlined_call_operand.hbm [shape: f32[2,8,32], index: 12, kind: output, shape index: {2}]
  %13 = xla_tuple %s10, %s11, %s12
  %s14 = sld [smem:[#allocation0]]
  $region78: #{tpu_custom_call.1} parent=0
    _
  %s16 = ssub.s32 1, %s14
  %s17 = scalar_select 0, %s16, %s14
  $region1: #{tpu_custom_call.1} parent=0
    #allocation2 [shape = 'u8[8192]{0}', space=vmem, size = 0x2000, scoped, tag = 'input window, operand 2, single buffered']
    #allocation3 [shape = 's32[1]{0}', space=sflag, size = 0x4, scoped, tag = 'scoped memory for tpu_custom_call.1']
    #allocation4 [shape = 's32[1]{0}', space=sflag, size = 0x4, scoped, tag = 'scoped memory for tpu_custom_call.1']
    #allocation5 [shape = 'u8[16384]{0}', space=vmem, size = 0x4000, scoped, tag = 'input window, operand 4, single buffered']
    #allocation6 [shape = 's32[1]{0}', space=sflag, size = 0x4, scoped, tag = 'scoped memory for tpu_custom_call.1']
    #allocation7 [shape = 'u8[16384]{0}', space=vmem, size = 0x4000, scoped, tag = 'input window, operand 8, single buffered']
    #allocation8 [shape = 'u8[8192]{0}', space=vmem, size = 0x2000, scoped, tag = 'output window, operand 1, single buffered']
    #allocation9 [shape = 'u8[8192]{0}', space=vmem, size = 0x2000, scoped, tag = 'output window, operand 2, single buffered']
    #allocation10 [shape = 's32[1]{0}', space=sflag, size = 0x4, scoped, tag = 'scoped memory for tpu_custom_call.1']
    %18 = vsyncpa [#allocation3], 0
    %19 = vsyncpa [#allocation6], 0
    %20 = vsyncpa [#allocation4], 0
    %21 = vsyncpa [#allocation10], 0
    // Predicated region
    $region2: #{tpu_custom_call.1} parent=1 // pred_check
      _
    $region3: #{tpu_custom_call.1} parent=1 // pred_check_branch
      %23 = sbr.rel (0) target = $region5
    $region4: #{tpu_custom_call.1} parent=1 // pred_region
      _
    $region5: #{tpu_custom_call.1} parent=1 // pred_fallthru
      _
    // Predicated region
    $region6: #{tpu_custom_call.1} parent=1 // pred_check
      _
    $region7: #{tpu_custom_call.1} parent=1 // pred_check_branch
      %25 = sbr.rel (0) target = $region9
    $region8: #{tpu_custom_call.1} parent=1 // pred_region
      _
    $region9: #{tpu_custom_call.1} parent=1 // pred_fallthru
      _
    // Predicated region
    $region10: #{tpu_custom_call.1} parent=1 // pred_check
      _
    $region11: #{tpu_custom_call.1} parent=1 // pred_check_branch
      %27 = sbr.rel (0) target = $region13
    $region12: #{tpu_custom_call.1} parent=1 // pred_region
      %s29 = ssub.s32 256, 256
      %30 = vsyncadd [#allocation3], %s29
      %s31 = sshll.u32 [#allocation2], 4
      %s32 = int_to_ptr.vmem [resolvable:$true] %s31
      %37 = dma.hbm_to_vmem [thread:$0]  %s2, 256, %s32, [#allocation3], 128, 128, 8
    $region13: #{tpu_custom_call.1} parent=1 // pred_fallthru
      _
    // Predicated region
    $region14: #{tpu_custom_call.1} parent=1 // pred_check
      _
    $region15: #{tpu_custom_call.1} parent=1 // pred_check_branch
      %39 = sbr.rel (0) target = $region17
    $region16: #{tpu_custom_call.1} parent=1 // pred_region
      _
    $region17: #{tpu_custom_call.1} parent=1 // pred_fallthru
      _
    // Predicated region
    $region18: #{tpu_custom_call.1} parent=1 // pred_check
      _
    $region19: #{tpu_custom_call.1} parent=1 // pred_check_branch
      %41 = sbr.rel (0) target = $region21
    $region20: #{tpu_custom_call.1} parent=1 // pred_region
      %s43 = ssub.s32 512, 512
      %44 = vsyncadd [#allocation6], %s43
      %s45 = sshll.u32 [#allocation5], 4
      %s46 = int_to_ptr.vmem [resolvable:$true] %s45
      %51 = dma.hbm_to_vmem [thread:$0]  %s4, 512, %s46, [#allocation6], 128, 128, 8
    $region21: #{tpu_custom_call.1} parent=1 // pred_fallthru
      _
    // Predicated region
    $region22: #{tpu_custom_call.1} parent=1 // pred_check
      _
    $region23: #{tpu_custom_call.1} parent=1 // pred_check_branch
      %53 = sbr.rel (0) target = $region25
    $region24: #{tpu_custom_call.1} parent=1 // pred_region
      _
    $region25: #{tpu_custom_call.1} parent=1 // pred_fallthru
      _
    // Predicated region
    $region26: #{tpu_custom_call.1} parent=1 // pred_check
      _
    $region27: #{tpu_custom_call.1} parent=1 // pred_check_branch
      %55 = sbr.rel (0) target = $region29
    $region28: #{tpu_custom_call.1} parent=1 // pred_region
      _
    $region29: #{tpu_custom_call.1} parent=1 // pred_fallthru
      _
    // Predicated region
    $region30: #{tpu_custom_call.1} parent=1 // pred_check
      _
    $region31: #{tpu_custom_call.1} parent=1 // pred_check_branch
      %57 = sbr.rel (0) target = $region33
    $region32: #{tpu_custom_call.1} parent=1 // pred_region
      _
    $region33: #{tpu_custom_call.1} parent=1 // pred_fallthru
      _
    // Predicated region
    $region34: #{tpu_custom_call.1} parent=1 // pred_check
      _
    $region35: #{tpu_custom_call.1} parent=1 // pred_check_branch
      %59 = sbr.rel (0) target = $region37
    $region36: #{tpu_custom_call.1} parent=1 // pred_region
      %s61 = ssub.s32 512, 512
      %62 = vsyncadd [#allocation6], %s61
      %s63 = sshll.u32 [#allocation7], 4
      %s64 = int_to_ptr.vmem [resolvable:$true] %s63
      %69 = dma.hbm_to_vmem [thread:$0]  %s8, 512, %s64, [#allocation6], 128, 128, 8
    $region37: #{tpu_custom_call.1} parent=1 // pred_fallthru
      _
    // Predicated region
    $region38: #{tpu_custom_call.1} parent=1 // pred_check
      _
    $region39: #{tpu_custom_call.1} parent=1 // pred_check_branch
      %71 = sbr.rel (0) target = $region41
    $region40: #{tpu_custom_call.1} parent=1 // pred_region
      _
    $region41: #{tpu_custom_call.1} parent=1 // pred_fallthru
      _
    // Predicated region
    $region42: #{tpu_custom_call.1} parent=1 // pred_check
      _
    $region43: #{tpu_custom_call.1} parent=1 // pred_check_branch
      %73 = sbr.rel (0) target = $region45
    $region44: #{tpu_custom_call.1} parent=1 // pred_region
      %74 = dma.done [#allocation3], 256
    $region45: #{tpu_custom_call.1} parent=1 // pred_fallthru
      _
    // Predicated region
    $region46: #{tpu_custom_call.1} parent=1 // pred_check
      _
    $region47: #{tpu_custom_call.1} parent=1 // pred_check_branch
      %76 = sbr.rel (0) target = $region49
    $region48: #{tpu_custom_call.1} parent=1 // pred_region
      %77 = dma.done [#allocation6], 512
    $region49: #{tpu_custom_call.1} parent=1 // pred_fallthru
      _
    // Predicated region
    $region50: #{tpu_custom_call.1} parent=1 // pred_check
      _
    $region51: #{tpu_custom_call.1} parent=1 // pred_check_branch
      %79 = sbr.rel (0) target = $region53
    $region52: #{tpu_custom_call.1} parent=1 // pred_region
      %80 = dma.done [#allocation6], 512
    $region53: #{tpu_custom_call.1} parent=1 // pred_fallthru
      _
    %v81 = vld [vmem:[%s1] sm:$0xff]
    %v82 = vld [vmem:[#allocation2] sm:$0xff]
    %s83 = scalar_lea.vmem %s1, 8
    %v84 = vld [vmem:[%s83] sm:$0xff]
    %s85 = scalar_lea.vmem [#allocation2], 8
    %v86 = vld [vmem:[%s85] sm:$0xff]
    %v87 = vld [vmem:[#allocation5] sm:$0xff]
    %v88 = vld [vmem:[#allocation5 + $0x8] sm:$0xff]
    %v89 = vld [vmem:[#allocation5 + $0x10] sm:$0xff]
    %v90 = vld [vmem:[#allocation5 + $0x18] sm:$0xff]
    %v91 = vld [vmem:[%s6] sm:$0xff]
    %v92 = vld [vmem:[%s6 + $0x8] sm:$0xff]
    %v93 = vld [vmem:[%s6 + $0x10] sm:$0xff]
    %v94 = vld [vmem:[%s6 + $0x18] sm:$0xff]
    %v95 = vld [vmem:[%s6 + $0x20] sm:$0xff]
    %v96 = vld [vmem:[%s6 + $0x28] sm:$0xff]
    %v97 = vld [vmem:[%s6 + $0x30] sm:$0xff]
    %v98 = vld [vmem:[%s6 + $0x38] sm:$0xff]
    %v99 = vld [vmem:[%s7] sm:$0x1]
    %v101 = vlaneseq
    %v102 = vshrl.u32 %v101, 7
    %v103 = vsub.s32 0, %v102
    %v104 = vrot.slane %v99, %v103
    %v106 = vld [vmem:[%s0] sm:$0xff]
    %v107 = vld [vmem:[%s0 + $0x8] sm:$0xff]
    %v108 = vld [vmem:[%s0 + $0x10] sm:$0xff]
    %v109 = vld [vmem:[%s0 + $0x18] sm:$0xff]
    %v110 = vld [vmem:[%s0 + $0x20] sm:$0xff]
    %v111 = vld [vmem:[%s0 + $0x28] sm:$0xff]
    %v112 = vld [vmem:[%s0 + $0x30] sm:$0xff]
    %v113 = vld [vmem:[%s0 + $0x38] sm:$0xff]
    %v114 = vld [vmem:[%s3] sm:$0xff]
    %v115 = vld [vmem:[%s3 + $0x8] sm:$0xff]
    %v116 = vld [vmem:[%s3 + $0x10] sm:$0xff]
    %v117 = vld [vmem:[%s3 + $0x18] sm:$0xff]
    %v118 = vld [vmem:[%s5] sm:$0x1]
    %v120 = vlaneseq
    %v121 = vshrl.u32 %v120, 7
    %v122 = vsub.s32 0, %v121
    %v123 = vrot.slane %v118, %v122
    %vm125 = vcmask 261120
    %v127 = vsel %vm125, %v106, 0
    %v130 = vsel %vm125, %v107, 0
    %v133 = vsel %vm125, %v108, 0
    %v136 = vsel %vm125, %v109, 0
    %v139 = vsel %vm125, %v110, 0
    %v142 = vsel %vm125, %v111, 0
    %v145 = vsel %vm125, %v112, 0
    %v148 = vsel %vm125, %v113, 0
    %150 = vmatprep.subr.mxu0 0.0
    %151 = vmatpush1.msra.mxu0 %v114
    %152 = vmatprep.subr.mxu0 0.0
    %153 = vmatpush1.msra.mxu0 %v115
    %154 = vmatprep.subr.mxu0 0.0
    %155 = vmatpush1.msra.mxu0 %v116
    %156 = vmatprep.subr.mxu0 0.0
    %157 = vmatpush1.msra.mxu0 %v117
    %158 = vmatprep.subr.mxu0 0.0
    %159 = vmatpush1.msra.mxu0 0.0
    %160 = vmatprep.subr.mxu0 0.0
    %161 = vmatpush1.msra.mxu0 0.0
    %162 = vmatprep.subr.mxu0 0.0
    %163 = vmatpush1.msra.mxu0 0.0
    %164 = vmatprep.subr.mxu0 0.0
    %165 = vmatpush1.msra.mxu0 0.0
    %166 = vmatprep.subr.mxu0 0.0
    %167 = vmatpush1.msra.mxu0 0.0
    %168 = vmatprep.subr.mxu0 0.0
    %169 = vmatpush1.msra.mxu0 0.0
    %170 = vmatprep.subr.mxu0 0.0
    %171 = vmatpush1.msra.mxu0 0.0
    %172 = vmatprep.subr.mxu0 0.0
    %173 = vmatpush1.msra.mxu0 0.0
    %174 = vmatprep.subr.mxu0 0.0
    %175 = vmatpush1.msra.mxu0 0.0
    %176 = vmatprep.subr.mxu0 0.0
    %177 = vmatpush1.msra.mxu0 0.0
    %178 = vmatprep.subr.mxu0 0.0
    %179 = vmatpush1.msra.mxu0 0.0
    %180 = vmatprep.subr.mxu0 0.0
    %181 = vmatpush1.msra.mxu0 0.0
    %182 = vmatprep.subr.mxu0 0.0
    %183 = vmatpush1.msra.mxu0 0.0
    %184 = vmatprep.subr.mxu0 0.0
    %185 = vmatpush1.msra.mxu0 0.0
    %186 = vmatprep.subr.mxu0 0.0
    %187 = vmatpush1.msra.mxu0 0.0
    %188 = vmatprep.subr.mxu0 0.0
    %189 = vmatpush1.msra.mxu0 0.0
    %190 = vmatprep.subr.mxu0 0.0
    %191 = vmatpush1.msra.mxu0 0.0
    %192 = vmatprep.subr.mxu0 0.0
    %193 = vmatpush1.msra.mxu0 0.0
    %194 = vmatprep.subr.mxu0 0.0
    %195 = vmatpush1.msra.mxu0 0.0
    %196 = vmatprep.subr.mxu0 0.0
    %197 = vmatpush1.msra.mxu0 0.0
    %198 = vmatprep.subr.mxu0 0.0
    %199 = vmatpush1.msra.mxu0 0.0
    %200 = vmatprep.subr.mxu0 0.0
    %201 = vmatpush1.msra.mxu0 0.0
    %202 = vmatprep.subr.mxu0 0.0
    %203 = vmatpush1.msra.mxu0 0.0
    %204 = vmatprep.subr.mxu0 0.0
    %205 = vmatpush1.msra.mxu0 0.0
    %206 = vmatprep.subr.mxu0 0.0
    %207 = vmatpush1.msra.mxu0 0.0
    %208 = vmatprep.subr.mxu0 0.0
    %209 = vmatpush1.msra.mxu0 0.0
    %210 = vmatprep.subr.mxu0 0.0
    %211 = vmatpush1.msra.mxu0 0.0
    %212 = vmatprep.subr.mxu0 0.0
    %213 = vmatpush1.msra.mxu0 0.0
    %214 = vmatprep.mubr.f32.mxu0 0.0
    %215 = vmatmul.mubr.f32.gmra.mrb[0].mxu0 %v127
    %v216 = vpop.f32.mrb[0].mxu0
    %v217 = vadd.f32 %v123, %v216
    %v218 = vpop.f32.mrb[0].mxu0
    %219 = vmatprep.mubr.f32.mxu0 0.0
    %220 = vmatmul.mubr.f32.gmra.mrb[0].mxu0 %v130
    %v221 = vpop.f32.mrb[0].mxu0
    %v222 = vadd.f32 %v123, %v221
    %v223 = vpop.f32.mrb[0].mxu0
    %224 = vmatprep.mubr.f32.mxu0 0.0
    %225 = vmatmul.mubr.f32.gmra.mrb[0].mxu0 %v133
    %v226 = vpop.f32.mrb[0].mxu0
    %v227 = vadd.f32 %v123, %v226
    %v228 = vpop.f32.mrb[0].mxu0
    %229 = vmatprep.mubr.f32.mxu0 0.0
    %230 = vmatmul.mubr.f32.gmra.mrb[0].mxu0 %v136
    %v231 = vpop.f32.mrb[0].mxu0
    %v232 = vadd.f32 %v123, %v231
    %v233 = vpop.f32.mrb[0].mxu0
    %234 = vmatprep.mubr.f32.mxu0 0.0
    %235 = vmatmul.mubr.f32.gmra.mrb[0].mxu0 %v139
    %v236 = vpop.f32.mrb[0].mxu0
    %v237 = vadd.f32 %v123, %v236
    %v238 = vpop.f32.mrb[0].mxu0
    %239 = vmatprep.mubr.f32.mxu0 0.0
    %240 = vmatmul.mubr.f32.gmra.mrb[0].mxu0 %v142
    %v241 = vpop.f32.mrb[0].mxu0
    %v242 = vadd.f32 %v123, %v241
    %v243 = vpop.f32.mrb[0].mxu0
    %244 = vmatprep.mubr.f32.mxu0 0.0
    %245 = vmatmul.mubr.f32.gmra.mrb[0].mxu0 %v145
    %v246 = vpop.f32.mrb[0].mxu0
    %v247 = vadd.f32 %v123, %v246
    %v248 = vpop.f32.mrb[0].mxu0
    %249 = vmatprep.mubr.f32.mxu0 0.0
    %250 = vmatmul.mubr.f32.gmra.mrb[0].mxu0 %v148
    %v251 = vpop.f32.mrb[0].mxu0
    %v252 = vadd.f32 %v123, %v251
    %v253 = vpop.f32.mrb[0].mxu0
    %254 = vdwg.mxu0
    %v256 = vsel %vm125, %v81, 0
    %258 = vmatprep.subr.mxu0 0.0
    %259 = vmatpush1.msra.mxu0 %v87
    %260 = vmatprep.subr.mxu0 0.0
    %261 = vmatpush1.msra.mxu0 %v88
    %262 = vmatprep.subr.mxu0 0.0
    %263 = vmatpush1.msra.mxu0 %v89
    %264 = vmatprep.subr.mxu0 0.0
    %265 = vmatpush1.msra.mxu0 %v90
    %266 = vmatprep.subr.mxu0 0.0
    %267 = vmatpush1.msra.mxu0 0.0
    %268 = vmatprep.subr.mxu0 0.0
    %269 = vmatpush1.msra.mxu0 0.0
    %270 = vmatprep.subr.mxu0 0.0
    %271 = vmatpush1.msra.mxu0 0.0
    %272 = vmatprep.subr.mxu0 0.0
    %273 = vmatpush1.msra.mxu0 0.0
    %274 = vmatprep.subr.mxu0 0.0
    %275 = vmatpush1.msra.mxu0 0.0
    %276 = vmatprep.subr.mxu0 0.0
    %277 = vmatpush1.msra.mxu0 0.0
    %278 = vmatprep.subr.mxu0 0.0
    %279 = vmatpush1.msra.mxu0 0.0
    %280 = vmatprep.subr.mxu0 0.0
    %281 = vmatpush1.msra.mxu0 0.0
    %282 = vmatprep.subr.mxu0 0.0
    %283 = vmatpush1.msra.mxu0 0.0
    %284 = vmatprep.subr.mxu0 0.0
    %285 = vmatpush1.msra.mxu0 0.0
    %286 = vmatprep.subr.mxu0 0.0
    %287 = vmatpush1.msra.mxu0 0.0
    %288 = vmatprep.subr.mxu0 0.0
    %289 = vmatpush1.msra.mxu0 0.0
    %290 = vmatprep.subr.mxu0 0.0
    %291 = vmatpush1.msra.mxu0 0.0
    %292 = vmatprep.subr.mxu0 0.0
    %293 = vmatpush1.msra.mxu0 0.0
    %294 = vmatprep.subr.mxu0 0.0
    %295 = vmatpush1.msra.mxu0 0.0
    %296 = vmatprep.subr.mxu0 0.0
    %297 = vmatpush1.msra.mxu0 0.0
    %298 = vmatprep.subr.mxu0 0.0
    %299 = vmatpush1.msra.mxu0 0.0
    %300 = vmatprep.subr.mxu0 0.0
    %301 = vmatpush1.msra.mxu0 0.0
    %302 = vmatprep.subr.mxu0 0.0
    %303 = vmatpush1.msra.mxu0 0.0
    %304 = vmatprep.subr.mxu0 0.0
    %305 = vmatpush1.msra.mxu0 0.0
    %306 = vmatprep.subr.mxu0 0.0
    %307 = vmatpush1.msra.mxu0 0.0
    %308 = vmatprep.subr.mxu0 0.0
    %309 = vmatpush1.msra.mxu0 0.0
    %310 = vmatprep.subr.mxu0 0.0
    %311 = vmatpush1.msra.mxu0 0.0
    %312 = vmatprep.subr.mxu0 0.0
    %313 = vmatpush1.msra.mxu0 0.0
    %314 = vmatprep.subr.mxu0 0.0
    %315 = vmatpush1.msra.mxu0 0.0
    %316 = vmatprep.subr.mxu0 0.0
    %317 = vmatpush1.msra.mxu0 0.0
    %318 = vmatprep.subr.mxu0 0.0
    %319 = vmatpush1.msra.mxu0 0.0
    %320 = vmatprep.subr.mxu0 0.0
    %321 = vmatpush1.msra.mxu0 0.0
    %322 = vmatprep.mubr.f32.mxu0 0.0
    %323 = vmatmul.mubr.f32.gmra.mrb[0].mxu0 %v256
    %v324 = vpop.f32.mrb[0].mxu0
    %v325 = vadd.f32 0.0, %v324
    %v326 = vpop.f32.mrb[0].mxu0
    %327 = vdwg.mxu0
    %v328 = vadd.f32 %v217, %v325
    %v329 = vxor.u32 %v328, 2147483648
    %v330 = vmul.f32 %v329, 1.442695
    %v331 = vpow.pop %v330
    %v332 = vadd.f32 %v331, 1.0
    %v333 = vrcp.pop %v332
    %v334 = vmul.f32 1.0, %v333
    %v335 = vtanh.pop %v328
    %337 = vrot.lane.b32.xlu0 %v82, 32
    %v338 = vpop.permute.xlu0 %337
    %v340 = vmul.f32 %v334, %v338
    %342 = vrot.lane.b32.xlu0 %v335, 64
    %v343 = vpop.permute.xlu0 %342
    %v345 = vmul.f32 %v334, %v343
    %347 = vrot.lane.b32.xlu0 %v345, 32
    %v348 = vpop.permute.xlu0 %347
    %v350 = vadd.f32 %v340, %v348
    %v351 = vtanh.pop %v350
    %353 = vrot.lane.b32.xlu0 %v351, 64
    %v354 = vpop.permute.xlu0 %353
    %v356 = vmul.f32 %v334, %v354
    %358 = vrot.lane.b32.xlu0 %v356, 32
    %v359 = vpop.permute.xlu0 %358
    %362 = vrot.lane.b32.xlu0 %v84, 32
    %v363 = vpop.permute.xlu0 %362
    %v365 = vsel %vm125, %v359, %v363
    %vm366 = vcmask 523264
    %v368 = vsel %vm366, %v365, 0
    %370 = vmatprep.subr.mxu0 0.0
    %371 = vmatpush1.msra.mxu0 %v91
    %372 = vmatprep.subr.mxu0 0.0
    %373 = vmatpush1.msra.mxu0 %v92
    %374 = vmatprep.subr.mxu0 0.0
    %375 = vmatpush1.msra.mxu0 %v93
    %376 = vmatprep.subr.mxu0 0.0
    %377 = vmatpush1.msra.mxu0 %v94
    %378 = vmatprep.subr.mxu0 0.0
    %379 = vmatpush1.msra.mxu0 %v95
    %380 = vmatprep.subr.mxu0 0.0
    %381 = vmatpush1.msra.mxu0 %v96
    %382 = vmatprep.subr.mxu0 0.0
    %383 = vmatpush1.msra.mxu0 %v97
    %384 = vmatprep.subr.mxu0 0.0
    %385 = vmatpush1.msra.mxu0 %v98
    %386 = vmatprep.subr.mxu0 0.0
    %387 = vmatpush1.msra.mxu0 0.0
    %388 = vmatprep.subr.mxu0 0.0
    %389 = vmatpush1.msra.mxu0 0.0
    %390 = vmatprep.subr.mxu0 0.0
    %391 = vmatpush1.msra.mxu0 0.0
    %392 = vmatprep.subr.mxu0 0.0
    %393 = vmatpush1.msra.mxu0 0.0
    %394 = vmatprep.subr.mxu0 0.0
    %395 = vmatpush1.msra.mxu0 0.0
    %396 = vmatprep.subr.mxu0 0.0
    %397 = vmatpush1.msra.mxu0 0.0
    %398 = vmatprep.subr.mxu0 0.0
    %399 = vmatpush1.msra.mxu0 0.0
    %400 = vmatprep.subr.mxu0 0.0
    %401 = vmatpush1.msra.mxu0 0.0
    %402 = vmatprep.subr.mxu0 0.0
    %403 = vmatpush1.msra.mxu0 0.0
    %404 = vmatprep.subr.mxu0 0.0
    %405 = vmatpush1.msra.mxu0 0.0
    %406 = vmatprep.subr.mxu0 0.0
    %407 = vmatpush1.msra.mxu0 0.0
    %408 = vmatprep.subr.mxu0 0.0
    %409 = vmatpush1.msra.mxu0 0.0
    %410 = vmatprep.subr.mxu0 0.0
    %411 = vmatpush1.msra.mxu0 0.0
    %412 = vmatprep.subr.mxu0 0.0
    %413 = vmatpush1.msra.mxu0 0.0
    %414 = vmatprep.subr.mxu0 0.0
    %415 = vmatpush1.msra.mxu0 0.0
    %416 = vmatprep.subr.mxu0 0.0
    %417 = vmatpush1.msra.mxu0 0.0
    %418 = vmatprep.subr.mxu0 0.0
    %419 = vmatpush1.msra.mxu0 0.0
    %420 = vmatprep.subr.mxu0 0.0
    %421 = vmatpush1.msra.mxu0 0.0
    %422 = vmatprep.subr.mxu0 0.0
    %423 = vmatpush1.msra.mxu0 0.0
    %424 = vmatprep.subr.mxu0 0.0
    %425 = vmatpush1.msra.mxu0 0.0
    %426 = vmatprep.subr.mxu0 0.0
    %427 = vmatpush1.msra.mxu0 0.0
    %428 = vmatprep.subr.mxu0 0.0
    %429 = vmatpush1.msra.mxu0 0.0
    %430 = vmatprep.subr.mxu0 0.0
    %431 = vmatpush1.msra.mxu0 0.0
    %432 = vmatprep.subr.mxu0 0.0
    %433 = vmatpush1.msra.mxu0 0.0
    %434 = vmatprep.mubr.f32.mxu0 0.0
    %435 = vmatmul.mubr.f32.gmra.mrb[0].mxu0 %v368
    %v436 = vpop.f32.mrb[0].mxu0
    %v437 = vadd.f32 %v104, %v436
    %v438 = vpop.f32.mrb[0].mxu0
    %439 = vdwg.mxu0
    %v440 = vxor.u32 %v437, 2147483648
    %v441 = vmul.f32 %v440, 1.442695
    %v442 = vpow.pop %v441
    %v443 = vadd.f32 %v442, 1.0
    %v444 = vrcp.pop %v443
    %v445 = vmul.f32 1.0, %v444
    %v446 = vtanh.pop %v437
    %448 = vrot.lane.b32.xlu0 %v86, 32
    %v449 = vpop.permute.xlu0 %448
    %v451 = vmul.f32 %v445, %v449
    %453 = vrot.lane.b32.xlu0 %v446, 64
    %v454 = vpop.permute.xlu0 %453
    %v456 = vmul.f32 %v445, %v454
    %458 = vrot.lane.b32.xlu0 %v456, 32
    %v459 = vpop.permute.xlu0 %458
    %v461 = vadd.f32 %v451, %v459
    %v462 = vtanh.pop %v461
    %464 = vrot.lane.b32.xlu0 %v462, 64
    %v465 = vpop.permute.xlu0 %464
    %v467 = vmul.f32 %v445, %v465
    %v468 = vsel %vm125, %v359, 0
    %470 = vmatprep.subr.mxu0 0.0
    %471 = vmatpush1.msra.mxu0 %v87
    %472 = vmatprep.subr.mxu0 0.0
    %473 = vmatpush1.msra.mxu0 %v88
    %474 = vmatprep.subr.mxu0 0.0
    %475 = vmatpush1.msra.mxu0 %v89
    %476 = vmatprep.subr.mxu0 0.0
    %477 = vmatpush1.msra.mxu0 %v90
    %478 = vmatprep.subr.mxu0 0.0
    %479 = vmatpush1.msra.mxu0 0.0
    %480 = vmatprep.subr.mxu0 0.0
    %481 = vmatpush1.msra.mxu0 0.0
    %482 = vmatprep.subr.mxu0 0.0
    %483 = vmatpush1.msra.mxu0 0.0
    %484 = vmatprep.subr.mxu0 0.0
    %485 = vmatpush1.msra.mxu0 0.0
    %486 = vmatprep.subr.mxu0 0.0
    %487 = vmatpush1.msra.mxu0 0.0
    %488 = vmatprep.subr.mxu0 0.0
    %489 = vmatpush1.msra.mxu0 0.0
    %490 = vmatprep.subr.mxu0 0.0
    %491 = vmatpush1.msra.mxu0 0.0
    %492 = vmatprep.subr.mxu0 0.0
    %493 = vmatpush1.msra.mxu0 0.0
    %494 = vmatprep.subr.mxu0 0.0
    %495 = vmatpush1.msra.mxu0 0.0
    %496 = vmatprep.subr.mxu0 0.0
    %497 = vmatpush1.msra.mxu0 0.0
    %498 = vmatprep.subr.mxu0 0.0
    %499 = vmatpush1.msra.mxu0 0.0
    %500 = vmatprep.subr.mxu0 0.0
    %501 = vmatpush1.msra.mxu0 0.0
    %502 = vmatprep.subr.mxu0 0.0
    %503 = vmatpush1.msra.mxu0 0.0
    %504 = vmatprep.subr.mxu0 0.0
    %505 = vmatpush1.msra.mxu0 0.0
    %506 = vmatprep.subr.mxu0 0.0
    %507 = vmatpush1.msra.mxu0 0.0
    %508 = vmatprep.subr.mxu0 0.0
    %509 = vmatpush1.msra.mxu0 0.0
    %510 = vmatprep.subr.mxu0 0.0
    %511 = vmatpush1.msra.mxu0 0.0
    %512 = vmatprep.subr.mxu0 0.0
    %513 = vmatpush1.msra.mxu0 0.0
    %514 = vmatprep.subr.mxu0 0.0
    %515 = vmatpush1.msra.mxu0 0.0
    %516 = vmatprep.subr.mxu0 0.0
    %517 = vmatpush1.msra.mxu0 0.0
    %518 = vmatprep.subr.mxu0 0.0
    %519 = vmatpush1.msra.mxu0 0.0
    %520 = vmatprep.subr.mxu0 0.0
    %521 = vmatpush1.msra.mxu0 0.0
    %522 = vmatprep.subr.mxu0 0.0
    %523 = vmatpush1.msra.mxu0 0.0
    %524 = vmatprep.subr.mxu0 0.0
    %525 = vmatpush1.msra.mxu0 0.0
    %526 = vmatprep.subr.mxu0 0.0
    %527 = vmatpush1.msra.mxu0 0.0
    %528 = vmatprep.subr.mxu0 0.0
    %529 = vmatpush1.msra.mxu0 0.0
    %530 = vmatprep.subr.mxu0 0.0
    %531 = vmatpush1.msra.mxu0 0.0
    %532 = vmatprep.subr.mxu0 0.0
    %533 = vmatpush1.msra.mxu0 0.0
    %534 = vmatprep.mubr.f32.mxu0 0.0
    %535 = vmatmul.mubr.f32.gmra.mrb[0].mxu0 %v468
    %v536 = vpop.f32.mrb[0].mxu0
    %v537 = vadd.f32 0.0, %v536
    %v538 = vpop.f32.mrb[0].mxu0
    %539 = vdwg.mxu0
    %v540 = vadd.f32 %v222, %v537
    %v541 = vxor.u32 %v540, 2147483648
    %v542 = vmul.f32 %v541, 1.442695
    %v543 = vpow.pop %v542
    %v544 = vadd.f32 %v543, 1.0
    %v545 = vrcp.pop %v544
    %v546 = vmul.f32 1.0, %v545
    %v547 = vtanh.pop %v540
    %v548 = vmul.f32 %v546, %v350
    %550 = vrot.lane.b32.xlu0 %v547, 64
    %v551 = vpop.permute.xlu0 %550
    %v553 = vmul.f32 %v546, %v551
    %555 = vrot.lane.b32.xlu0 %v553, 32
    %v556 = vpop.permute.xlu0 %555
    %v558 = vadd.f32 %v548, %v556
    %v559 = vtanh.pop %v558
    %561 = vrot.lane.b32.xlu0 %v559, 64
    %v562 = vpop.permute.xlu0 %561
    %v564 = vmul.f32 %v546, %v562
    %566 = vrot.lane.b32.xlu0 %v564, 32
    %v567 = vpop.permute.xlu0 %566
    %570 = vrot.lane.b32.xlu0 %v467, 64
    %v571 = vpop.permute.xlu0 %570
    %v573 = vsel %vm125, %v567, %v571
    %v575 = vsel %vm366, %v573, 0
    %577 = vmatprep.subr.mxu0 0.0
    %578 = vmatpush1.msra.mxu0 %v91
    %579 = vmatprep.subr.mxu0 0.0
    %580 = vmatpush1.msra.mxu0 %v92
    %581 = vmatprep.subr.mxu0 0.0
    %582 = vmatpush1.msra.mxu0 %v93
    %583 = vmatprep.subr.mxu0 0.0
    %584 = vmatpush1.msra.mxu0 %v94
    %585 = vmatprep.subr.mxu0 0.0
    %586 = vmatpush1.msra.mxu0 %v95
    %587 = vmatprep.subr.mxu0 0.0
    %588 = vmatpush1.msra.mxu0 %v96
    %589 = vmatprep.subr.mxu0 0.0
    %590 = vmatpush1.msra.mxu0 %v97
    %591 = vmatprep.subr.mxu0 0.0
    %592 = vmatpush1.msra.mxu0 %v98
    %593 = vmatprep.subr.mxu0 0.0
    %594 = vmatpush1.msra.mxu0 0.0
    %595 = vmatprep.subr.mxu0 0.0
    %596 = vmatpush1.msra.mxu0 0.0
    %597 = vmatprep.subr.mxu0 0.0
    %598 = vmatpush1.msra.mxu0 0.0
    %599 = vmatprep.subr.mxu0 0.0
    %600 = vmatpush1.msra.mxu0 0.0
    %601 = vmatprep.subr.mxu0 0.0
    %602 = vmatpush1.msra.mxu0 0.0
    %603 = vmatprep.subr.mxu0 0.0
    %604 = vmatpush1.msra.mxu0 0.0
    %605 = vmatprep.subr.mxu0 0.0
    %606 = vmatpush1.msra.mxu0 0.0
    %607 = vmatprep.subr.mxu0 0.0
    %608 = vmatpush1.msra.mxu0 0.0
    %609 = vmatprep.subr.mxu0 0.0
    %610 = vmatpush1.msra.mxu0 0.0
    %611 = vmatprep.subr.mxu0 0.0
    %612 = vmatpush1.msra.mxu0 0.0
    %613 = vmatprep.subr.mxu0 0.0
    %614 = vmatpush1.msra.mxu0 0.0
    %615 = vmatprep.subr.mxu0 0.0
    %616 = vmatpush1.msra.mxu0 0.0
    %617 = vmatprep.subr.mxu0 0.0
    %618 = vmatpush1.msra.mxu0 0.0
    %619 = vmatprep.subr.mxu0 0.0
    %620 = vmatpush1.msra.mxu0 0.0
    %621 = vmatprep.subr.mxu0 0.0
    %622 = vmatpush1.msra.mxu0 0.0
    %623 = vmatprep.subr.mxu0 0.0
    %624 = vmatpush1.msra.mxu0 0.0
    %625 = vmatprep.subr.mxu0 0.0
    %626 = vmatpush1.msra.mxu0 0.0
    %627 = vmatprep.subr.mxu0 0.0
    %628 = vmatpush1.msra.mxu0 0.0
    %629 = vmatprep.subr.mxu0 0.0
    %630 = vmatpush1.msra.mxu0 0.0
    %631 = vmatprep.subr.mxu0 0.0
    %632 = vmatpush1.msra.mxu0 0.0
    %633 = vmatprep.subr.mxu0 0.0
    %634 = vmatpush1.msra.mxu0 0.0
    %635 = vmatprep.subr.mxu0 0.0
    %636 = vmatpush1.msra.mxu0 0.0
    %637 = vmatprep.subr.mxu0 0.0
    %638 = vmatpush1.msra.mxu0 0.0
    %639 = vmatprep.subr.mxu0 0.0
    %640 = vmatpush1.msra.mxu0 0.0
    %641 = vmatprep.mubr.f32.mxu0 0.0
    %642 = vmatmul.mubr.f32.gmra.mrb[0].mxu0 %v575
    %v643 = vpop.f32.mrb[0].mxu0
    %v644 = vadd.f32 %v104, %v643
    %v645 = vpop.f32.mrb[0].mxu0
    %646 = vdwg.mxu0
    %v647 = vxor.u32 %v644, 2147483648
    %v648 = vmul.f32 %v647, 1.442695
    %v649 = vpow.pop %v648
    %v650 = vadd.f32 %v649, 1.0
    %v651 = vrcp.pop %v650
    %v652 = vmul.f32 1.0, %v651
    %v653 = vtanh.pop %v644
    %v654 = vmul.f32 %v652, %v461
    %656 = vrot.lane.b32.xlu0 %v653, 64
    %v657 = vpop.permute.xlu0 %656
    %v659 = vmul.f32 %v652, %v657
    %661 = vrot.lane.b32.xlu0 %v659, 32
    %v662 = vpop.permute.xlu0 %661
    %v664 = vadd.f32 %v654, %v662
    %v665 = vtanh.pop %v664
    %667 = vrot.lane.b32.xlu0 %v665, 64
    %v668 = vpop.permute.xlu0 %667
    %v670 = vmul.f32 %v652, %v668
    %v671 = vsel %vm125, %v567, 0
    %673 = vmatprep.subr.mxu0 0.0
    %674 = vmatpush1.msra.mxu0 %v87
    %675 = vmatprep.subr.mxu0 0.0
    %676 = vmatpush1.msra.mxu0 %v88
    %677 = vmatprep.subr.mxu0 0.0
    %678 = vmatpush1.msra.mxu0 %v89
    %679 = vmatprep.subr.mxu0 0.0
    %680 = vmatpush1.msra.mxu0 %v90
    %681 = vmatprep.subr.mxu0 0.0
    %682 = vmatpush1.msra.mxu0 0.0
    %683 = vmatprep.subr.mxu0 0.0
    %684 = vmatpush1.msra.mxu0 0.0
    %685 = vmatprep.subr.mxu0 0.0
    %686 = vmatpush1.msra.mxu0 0.0
    %687 = vmatprep.subr.mxu0 0.0
    %688 = vmatpush1.msra.mxu0 0.0
    %689 = vmatprep.subr.mxu0 0.0
    %690 = vmatpush1.msra.mxu0 0.0
    %691 = vmatprep.subr.mxu0 0.0
    %692 = vmatpush1.msra.mxu0 0.0
    %693 = vmatprep.subr.mxu0 0.0
    %694 = vmatpush1.msra.mxu0 0.0
    %695 = vmatprep.subr.mxu0 0.0
    %696 = vmatpush1.msra.mxu0 0.0
    %697 = vmatprep.subr.mxu0 0.0
    %698 = vmatpush1.msra.mxu0 0.0
    %699 = vmatprep.subr.mxu0 0.0
    %700 = vmatpush1.msra.mxu0 0.0
    %701 = vmatprep.subr.mxu0 0.0
    %702 = vmatpush1.msra.mxu0 0.0
    %703 = vmatprep.subr.mxu0 0.0
    %704 = vmatpush1.msra.mxu0 0.0
    %705 = vmatprep.subr.mxu0 0.0
    %706 = vmatpush1.msra.mxu0 0.0
    %707 = vmatprep.subr.mxu0 0.0
    %708 = vmatpush1.msra.mxu0 0.0
    %709 = vmatprep.subr.mxu0 0.0
    %710 = vmatpush1.msra.mxu0 0.0
    %711 = vmatprep.subr.mxu0 0.0
    %712 = vmatpush1.msra.mxu0 0.0
    %713 = vmatprep.subr.mxu0 0.0
    %714 = vmatpush1.msra.mxu0 0.0
    %715 = vmatprep.subr.mxu0 0.0
    %716 = vmatpush1.msra.mxu0 0.0
    %717 = vmatprep.subr.mxu0 0.0
    %718 = vmatpush1.msra.mxu0 0.0
    %719 = vmatprep.subr.mxu0 0.0
    %720 = vmatpush1.msra.mxu0 0.0
    %721 = vmatprep.subr.mxu0 0.0
    %722 = vmatpush1.msra.mxu0 0.0
    %723 = vmatprep.subr.mxu0 0.0
    %724 = vmatpush1.msra.mxu0 0.0
    %725 = vmatprep.subr.mxu0 0.0
    %726 = vmatpush1.msra.mxu0 0.0
    %727 = vmatprep.subr.mxu0 0.0
    %728 = vmatpush1.msra.mxu0 0.0
    %729 = vmatprep.subr.mxu0 0.0
    %730 = vmatpush1.msra.mxu0 0.0
    %731 = vmatprep.subr.mxu0 0.0
    %732 = vmatpush1.msra.mxu0 0.0
    %733 = vmatprep.subr.mxu0 0.0
    %734 = vmatpush1.msra.mxu0 0.0
    %735 = vmatprep.subr.mxu0 0.0
    %736 = vmatpush1.msra.mxu0 0.0
    %737 = vmatprep.mubr.f32.mxu0 0.0
    %738 = vmatmul.mubr.f32.gmra.mrb[0].mxu0 %v671
    %v739 = vpop.f32.mrb[0].mxu0
    %v740 = vadd.f32 0.0, %v739
    %v741 = vpop.f32.mrb[0].mxu0
    %742 = vdwg.mxu0
    %v743 = vadd.f32 %v227, %v740
    %v744 = vxor.u32 %v743, 2147483648
    %v745 = vmul.f32 %v744, 1.442695
    %v746 = vpow.pop %v745
    %v747 = vadd.f32 %v746, 1.0
    %v748 = vrcp.pop %v747
    %v749 = vmul.f32 1.0, %v748
    %v750 = vtanh.pop %v743
    %v751 = vmul.f32 %v749, %v558
    %753 = vrot.lane.b32.xlu0 %v750, 64
    %v754 = vpop.permute.xlu0 %753
    %v756 = vmul.f32 %v749, %v754
    %758 = vrot.lane.b32.xlu0 %v756, 32
    %v759 = vpop.permute.xlu0 %758
    %v761 = vadd.f32 %v751, %v759
    %v762 = vtanh.pop %v761
    %764 = vrot.lane.b32.xlu0 %v762, 64
    %v765 = vpop.permute.xlu0 %764
    %v767 = vmul.f32 %v749, %v765
    %769 = vrot.lane.b32.xlu0 %v767, 32
    %v770 = vpop.permute.xlu0 %769
    %773 = vrot.lane.b32.xlu0 %v670, 64
    %v774 = vpop.permute.xlu0 %773
    %v776 = vsel %vm125, %v770, %v774
    %v778 = vsel %vm366, %v776, 0
    %780 = vmatprep.subr.mxu0 0.0
    %781 = vmatpush1.msra.mxu0 %v91
    %782 = vmatprep.subr.mxu0 0.0
    %783 = vmatpush1.msra.mxu0 %v92
    %784 = vmatprep.subr.mxu0 0.0
    %785 = vmatpush1.msra.mxu0 %v93
    %786 = vmatprep.subr.mxu0 0.0
    %787 = vmatpush1.msra.mxu0 %v94
    %788 = vmatprep.subr.mxu0 0.0
    %789 = vmatpush1.msra.mxu0 %v95
    %790 = vmatprep.subr.mxu0 0.0
    %791 = vmatpush1.msra.mxu0 %v96
    %792 = vmatprep.subr.mxu0 0.0
    %793 = vmatpush1.msra.mxu0 %v97
    %794 = vmatprep.subr.mxu0 0.0
    %795 = vmatpush1.msra.mxu0 %v98
    %796 = vmatprep.subr.mxu0 0.0
    %797 = vmatpush1.msra.mxu0 0.0
    %798 = vmatprep.subr.mxu0 0.0
    %799 = vmatpush1.msra.mxu0 0.0
    %800 = vmatprep.subr.mxu0 0.0
    %801 = vmatpush1.msra.mxu0 0.0
    %802 = vmatprep.subr.mxu0 0.0
    %803 = vmatpush1.msra.mxu0 0.0
    %804 = vmatprep.subr.mxu0 0.0
    %805 = vmatpush1.msra.mxu0 0.0
    %806 = vmatprep.subr.mxu0 0.0
    %807 = vmatpush1.msra.mxu0 0.0
    %808 = vmatprep.subr.mxu0 0.0
    %809 = vmatpush1.msra.mxu0 0.0
    %810 = vmatprep.subr.mxu0 0.0
    %811 = vmatpush1.msra.mxu0 0.0
    %812 = vmatprep.subr.mxu0 0.0
    %813 = vmatpush1.msra.mxu0 0.0
    %814 = vmatprep.subr.mxu0 0.0
    %815 = vmatpush1.msra.mxu0 0.0
    %816 = vmatprep.subr.mxu0 0.0
    %817 = vmatpush1.msra.mxu0 0.0
    %818 = vmatprep.subr.mxu0 0.0
    %819 = vmatpush1.msra.mxu0 0.0
    %820 = vmatprep.subr.mxu0 0.0
    %821 = vmatpush1.msra.mxu0 0.0
    %822 = vmatprep.subr.mxu0 0.0
    %823 = vmatpush1.msra.mxu0 0.0
    %824 = vmatprep.subr.mxu0 0.0
    %825 = vmatpush1.msra.mxu0 0.0
    %826 = vmatprep.subr.mxu0 0.0
    %827 = vmatpush1.msra.mxu0 0.0
    %828 = vmatprep.subr.mxu0 0.0
    %829 = vmatpush1.msra.mxu0 0.0
    %830 = vmatprep.subr.mxu0 0.0
    %831 = vmatpush1.msra.mxu0 0.0
    %832 = vmatprep.subr.mxu0 0.0
    %833 = vmatpush1.msra.mxu0 0.0
    %834 = vmatprep.subr.mxu0 0.0
    %835 = vmatpush1.msra.mxu0 0.0
    %836 = vmatprep.subr.mxu0 0.0
    %837 = vmatpush1.msra.mxu0 0.0
    %838 = vmatprep.subr.mxu0 0.0
    %839 = vmatpush1.msra.mxu0 0.0
    %840 = vmatprep.subr.mxu0 0.0
    %841 = vmatpush1.msra.mxu0 0.0
    %842 = vmatprep.subr.mxu0 0.0
    %843 = vmatpush1.msra.mxu0 0.0
    %844 = vmatprep.mubr.f32.mxu0 0.0
    %845 = vmatmul.mubr.f32.gmra.mrb[0].mxu0 %v778
    %v846 = vpop.f32.mrb[0].mxu0
    %v847 = vadd.f32 %v104, %v846
    %v848 = vpop.f32.mrb[0].mxu0
    %849 = vdwg.mxu0
    %v850 = vxor.u32 %v847, 2147483648
    %v851 = vmul.f32 %v850, 1.442695
    %v852 = vpow.pop %v851
    %v853 = vadd.f32 %v852, 1.0
    %v854 = vrcp.pop %v853
    %v855 = vmul.f32 1.0, %v854
    %v856 = vtanh.pop %v847
    %v857 = vmul.f32 %v855, %v664
    %859 = vrot.lane.b32.xlu0 %v856, 64
    %v860 = vpop.permute.xlu0 %859
    %v862 = vmul.f32 %v855, %v860
    %864 = vrot.lane.b32.xlu0 %v862, 32
    %v865 = vpop.permute.xlu0 %864
    %v867 = vadd.f32 %v857, %v865
    %v868 = vtanh.pop %v867
    %870 = vrot.lane.b32.xlu0 %v868, 64
    %v871 = vpop.permute.xlu0 %870
    %v873 = vmul.f32 %v855, %v871
    %v874 = vsel %vm125, %v770, 0
    %876 = vmatprep.subr.mxu0 0.0
    %877 = vmatpush1.msra.mxu0 %v87
    %878 = vmatprep.subr.mxu0 0.0
    %879 = vmatpush1.msra.mxu0 %v88
    %880 = vmatprep.subr.mxu0 0.0
    %881 = vmatpush1.msra.mxu0 %v89
    %882 = vmatprep.subr.mxu0 0.0
    %883 = vmatpush1.msra.mxu0 %v90
    %884 = vmatprep.subr.mxu0 0.0
    %885 = vmatpush1.msra.mxu0 0.0
    %886 = vmatprep.subr.mxu0 0.0
    %887 = vmatpush1.msra.mxu0 0.0
    %888 = vmatprep.subr.mxu0 0.0
    %889 = vmatpush1.msra.mxu0 0.0
    %890 = vmatprep.subr.mxu0 0.0
    %891 = vmatpush1.msra.mxu0 0.0
    %892 = vmatprep.subr.mxu0 0.0
    %893 = vmatpush1.msra.mxu0 0.0
    %894 = vmatprep.subr.mxu0 0.0
    %895 = vmatpush1.msra.mxu0 0.0
    %896 = vmatprep.subr.mxu0 0.0
    %897 = vmatpush1.msra.mxu0 0.0
    %898 = vmatprep.subr.mxu0 0.0
    %899 = vmatpush1.msra.mxu0 0.0
    %900 = vmatprep.subr.mxu0 0.0
    %901 = vmatpush1.msra.mxu0 0.0
    %902 = vmatprep.subr.mxu0 0.0
    %903 = vmatpush1.msra.mxu0 0.0
    %904 = vmatprep.subr.mxu0 0.0
    %905 = vmatpush1.msra.mxu0 0.0
    %906 = vmatprep.subr.mxu0 0.0
    %907 = vmatpush1.msra.mxu0 0.0
    %908 = vmatprep.subr.mxu0 0.0
    %909 = vmatpush1.msra.mxu0 0.0
    %910 = vmatprep.subr.mxu0 0.0
    %911 = vmatpush1.msra.mxu0 0.0
    %912 = vmatprep.subr.mxu0 0.0
    %913 = vmatpush1.msra.mxu0 0.0
    %914 = vmatprep.subr.mxu0 0.0
    %915 = vmatpush1.msra.mxu0 0.0
    %916 = vmatprep.subr.mxu0 0.0
    %917 = vmatpush1.msra.mxu0 0.0
    %918 = vmatprep.subr.mxu0 0.0
    %919 = vmatpush1.msra.mxu0 0.0
    %920 = vmatprep.subr.mxu0 0.0
    %921 = vmatpush1.msra.mxu0 0.0
    %922 = vmatprep.subr.mxu0 0.0
    %923 = vmatpush1.msra.mxu0 0.0
    %924 = vmatprep.subr.mxu0 0.0
    %925 = vmatpush1.msra.mxu0 0.0
    %926 = vmatprep.subr.mxu0 0.0
    %927 = vmatpush1.msra.mxu0 0.0
    %928 = vmatprep.subr.mxu0 0.0
    %929 = vmatpush1.msra.mxu0 0.0
    %930 = vmatprep.subr.mxu0 0.0
    %931 = vmatpush1.msra.mxu0 0.0
    %932 = vmatprep.subr.mxu0 0.0
    %933 = vmatpush1.msra.mxu0 0.0
    %934 = vmatprep.subr.mxu0 0.0
    %935 = vmatpush1.msra.mxu0 0.0
    %936 = vmatprep.subr.mxu0 0.0
    %937 = vmatpush1.msra.mxu0 0.0
    %938 = vmatprep.subr.mxu0 0.0
    %939 = vmatpush1.msra.mxu0 0.0
    %940 = vmatprep.mubr.f32.mxu0 0.0
    %941 = vmatmul.mubr.f32.gmra.mrb[0].mxu0 %v874
    %v942 = vpop.f32.mrb[0].mxu0
    %v943 = vadd.f32 0.0, %v942
    %v944 = vpop.f32.mrb[0].mxu0
    %945 = vdwg.mxu0
    %v946 = vadd.f32 %v232, %v943
    %v947 = vxor.u32 %v946, 2147483648
    %v948 = vmul.f32 %v947, 1.442695
    %v949 = vpow.pop %v948
    %v950 = vadd.f32 %v949, 1.0
    %v951 = vrcp.pop %v950
    %v952 = vmul.f32 1.0, %v951
    %v953 = vtanh.pop %v946
    %v954 = vmul.f32 %v952, %v761
    %956 = vrot.lane.b32.xlu0 %v953, 64
    %v957 = vpop.permute.xlu0 %956
    %v959 = vmul.f32 %v952, %v957
    %961 = vrot.lane.b32.xlu0 %v959, 32
    %v962 = vpop.permute.xlu0 %961
    %v964 = vadd.f32 %v954, %v962
    %v965 = vtanh.pop %v964
    %967 = vrot.lane.b32.xlu0 %v965, 64
    %v968 = vpop.permute.xlu0 %967
    %v970 = vmul.f32 %v952, %v968
    %972 = vrot.lane.b32.xlu0 %v970, 32
    %v973 = vpop.permute.xlu0 %972
    %976 = vrot.lane.b32.xlu0 %v873, 64
    %v977 = vpop.permute.xlu0 %976
    %v979 = vsel %vm125, %v973, %v977
    %v981 = vsel %vm366, %v979, 0
    %983 = vmatprep.subr.mxu0 0.0
    %984 = vmatpush1.msra.mxu0 %v91
    %985 = vmatprep.subr.mxu0 0.0
    %986 = vmatpush1.msra.mxu0 %v92
    %987 = vmatprep.subr.mxu0 0.0
    %988 = vmatpush1.msra.mxu0 %v93
    %989 = vmatprep.subr.mxu0 0.0
    %990 = vmatpush1.msra.mxu0 %v94
    %991 = vmatprep.subr.mxu0 0.0
    %992 = vmatpush1.msra.mxu0 %v95
    %993 = vmatprep.subr.mxu0 0.0
    %994 = vmatpush1.msra.mxu0 %v96
    %995 = vmatprep.subr.mxu0 0.0
    %996 = vmatpush1.msra.mxu0 %v97
    %997 = vmatprep.subr.mxu0 0.0
    %998 = vmatpush1.msra.mxu0 %v98
    %999 = vmatprep.subr.mxu0 0.0
    %1000 = vmatpush1.msra.mxu0 0.0
    %1001 = vmatprep.subr.mxu0 0.0
    %1002 = vmatpush1.msra.mxu0 0.0
    %1003 = vmatprep.subr.mxu0 0.0
    %1004 = vmatpush1.msra.mxu0 0.0
    %1005 = vmatprep.subr.mxu0 0.0
    %1006 = vmatpush1.msra.mxu0 0.0
    %1007 = vmatprep.subr.mxu0 0.0
    %1008 = vmatpush1.msra.mxu0 0.0
    %1009 = vmatprep.subr.mxu0 0.0
    %1010 = vmatpush1.msra.mxu0 0.0
    %1011 = vmatprep.subr.mxu0 0.0
    %1012 = vmatpush1.msra.mxu0 0.0
    %1013 = vmatprep.subr.mxu0 0.0
    %1014 = vmatpush1.msra.mxu0 0.0
    %1015 = vmatprep.subr.mxu0 0.0
    %1016 = vmatpush1.msra.mxu0 0.0
    %1017 = vmatprep.subr.mxu0 0.0
    %1018 = vmatpush1.msra.mxu0 0.0
    %1019 = vmatprep.subr.mxu0 0.0
    %1020 = vmatpush1.msra.mxu0 0.0
    %1021 = vmatprep.subr.mxu0 0.0
    %1022 = vmatpush1.msra.mxu0 0.0
    %1023 = vmatprep.subr.mxu0 0.0
    %1024 = vmatpush1.msra.mxu0 0.0
    %1025 = vmatprep.subr.mxu0 0.0
    %1026 = vmatpush1.msra.mxu0 0.0
    %1027 = vmatprep.subr.mxu0 0.0
    %1028 = vmatpush1.msra.mxu0 0.0
    %1029 = vmatprep.subr.mxu0 0.0
    %1030 = vmatpush1.msra.mxu0 0.0
    %1031 = vmatprep.subr.mxu0 0.0
    %1032 = vmatpush1.msra.mxu0 0.0
    %1033 = vmatprep.subr.mxu0 0.0
    %1034 = vmatpush1.msra.mxu0 0.0
    %1035 = vmatprep.subr.mxu0 0.0
    %1036 = vmatpush1.msra.mxu0 0.0
    %1037 = vmatprep.subr.mxu0 0.0
    %1038 = vmatpush1.msra.mxu0 0.0
    %1039 = vmatprep.subr.mxu0 0.0
    %1040 = vmatpush1.msra.mxu0 0.0
    %1041 = vmatprep.subr.mxu0 0.0
    %1042 = vmatpush1.msra.mxu0 0.0
    %1043 = vmatprep.subr.mxu0 0.0
    %1044 = vmatpush1.msra.mxu0 0.0
    %1045 = vmatprep.subr.mxu0 0.0
    %1046 = vmatpush1.msra.mxu0 0.0
    %1047 = vmatprep.mubr.f32.mxu0 0.0
    %1048 = vmatmul.mubr.f32.gmra.mrb[0].mxu0 %v981
    %v1049 = vpop.f32.mrb[0].mxu0
    %v1050 = vadd.f32 %v104, %v1049
    %v1051 = vpop.f32.mrb[0].mxu0
    %1052 = vdwg.mxu0
    %v1053 = vxor.u32 %v1050, 2147483648
    %v1054 = vmul.f32 %v1053, 1.442695
    %v1055 = vpow.pop %v1054
    %v1056 = vadd.f32 %v1055, 1.0
    %v1057 = vrcp.pop %v1056
    %v1058 = vmul.f32 1.0, %v1057
    %v1059 = vtanh.pop %v1050
    %v1060 = vmul.f32 %v1058, %v867
    %1062 = vrot.lane.b32.xlu0 %v1059, 64
    %v1063 = vpop.permute.xlu0 %1062
    %v1065 = vmul.f32 %v1058, %v1063
    %1067 = vrot.lane.b32.xlu0 %v1065, 32
    %v1068 = vpop.permute.xlu0 %1067
    %v1070 = vadd.f32 %v1060, %v1068
    %v1071 = vtanh.pop %v1070
    %1073 = vrot.lane.b32.xlu0 %v1071, 64
    %v1074 = vpop.permute.xlu0 %1073
    %v1076 = vmul.f32 %v1058, %v1074
    %v1077 = vsel %vm125, %v973, 0
    %1079 = vmatprep.subr.mxu0 0.0
    %1080 = vmatpush1.msra.mxu0 %v87
    %1081 = vmatprep.subr.mxu0 0.0
    %1082 = vmatpush1.msra.mxu0 %v88
    %1083 = vmatprep.subr.mxu0 0.0
    %1084 = vmatpush1.msra.mxu0 %v89
    %1085 = vmatprep.subr.mxu0 0.0
    %1086 = vmatpush1.msra.mxu0 %v90
    %1087 = vmatprep.subr.mxu0 0.0
    %1088 = vmatpush1.msra.mxu0 0.0
    %1089 = vmatprep.subr.mxu0 0.0
    %1090 = vmatpush1.msra.mxu0 0.0
    %1091 = vmatprep.subr.mxu0 0.0
    %1092 = vmatpush1.msra.mxu0 0.0
    %1093 = vmatprep.subr.mxu0 0.0
    %1094 = vmatpush1.msra.mxu0 0.0
    %1095 = vmatprep.subr.mxu0 0.0
    %1096 = vmatpush1.msra.mxu0 0.0
    %1097 = vmatprep.subr.mxu0 0.0
    %1098 = vmatpush1.msra.mxu0 0.0
    %1099 = vmatprep.subr.mxu0 0.0
    %1100 = vmatpush1.msra.mxu0 0.0
    %1101 = vmatprep.subr.mxu0 0.0
    %1102 = vmatpush1.msra.mxu0 0.0
    %1103 = vmatprep.subr.mxu0 0.0
    %1104 = vmatpush1.msra.mxu0 0.0
    %1105 = vmatprep.subr.mxu0 0.0
    %1106 = vmatpush1.msra.mxu0 0.0
    %1107 = vmatprep.subr.mxu0 0.0
    %1108 = vmatpush1.msra.mxu0 0.0
    %1109 = vmatprep.subr.mxu0 0.0
    %1110 = vmatpush1.msra.mxu0 0.0
    %1111 = vmatprep.subr.mxu0 0.0
    %1112 = vmatpush1.msra.mxu0 0.0
    %1113 = vmatprep.subr.mxu0 0.0
    %1114 = vmatpush1.msra.mxu0 0.0
    %1115 = vmatprep.subr.mxu0 0.0
    %1116 = vmatpush1.msra.mxu0 0.0
    %1117 = vmatprep.subr.mxu0 0.0
    %1118 = vmatpush1.msra.mxu0 0.0
    %1119 = vmatprep.subr.mxu0 0.0
    %1120 = vmatpush1.msra.mxu0 0.0
    %1121 = vmatprep.subr.mxu0 0.0
    %1122 = vmatpush1.msra.mxu0 0.0
    %1123 = vmatprep.subr.mxu0 0.0
    %1124 = vmatpush1.msra.mxu0 0.0
    %1125 = vmatprep.subr.mxu0 0.0
    %1126 = vmatpush1.msra.mxu0 0.0
    %1127 = vmatprep.subr.mxu0 0.0
    %1128 = vmatpush1.msra.mxu0 0.0
    %1129 = vmatprep.subr.mxu0 0.0
    %1130 = vmatpush1.msra.mxu0 0.0
    %1131 = vmatprep.subr.mxu0 0.0
    %1132 = vmatpush1.msra.mxu0 0.0
    %1133 = vmatprep.subr.mxu0 0.0
    %1134 = vmatpush1.msra.mxu0 0.0
    %1135 = vmatprep.subr.mxu0 0.0
    %1136 = vmatpush1.msra.mxu0 0.0
    %1137 = vmatprep.subr.mxu0 0.0
    %1138 = vmatpush1.msra.mxu0 0.0
    %1139 = vmatprep.subr.mxu0 0.0
    %1140 = vmatpush1.msra.mxu0 0.0
    %1141 = vmatprep.subr.mxu0 0.0
    %1142 = vmatpush1.msra.mxu0 0.0
    %1143 = vmatprep.mubr.f32.mxu0 0.0
    %1144 = vmatmul.mubr.f32.gmra.mrb[0].mxu0 %v1077
    %v1145 = vpop.f32.mrb[0].mxu0
    %v1146 = vadd.f32 0.0, %v1145
    %v1147 = vpop.f32.mrb[0].mxu0
    %1148 = vdwg.mxu0
    %v1149 = vadd.f32 %v237, %v1146
    %v1150 = vxor.u32 %v1149, 2147483648
    %v1151 = vmul.f32 %v1150, 1.442695
    %v1152 = vpow.pop %v1151
    %v1153 = vadd.f32 %v1152, 1.0
    %v1154 = vrcp.pop %v1153
    %v1155 = vmul.f32 1.0, %v1154
    %v1156 = vtanh.pop %v1149
    %v1157 = vmul.f32 %v1155, %v964
    %1159 = vrot.lane.b32.xlu0 %v1156, 64
    %v1160 = vpop.permute.xlu0 %1159
    %v1162 = vmul.f32 %v1155, %v1160
    %1164 = vrot.lane.b32.xlu0 %v1162, 32
    %v1165 = vpop.permute.xlu0 %1164
    %v1167 = vadd.f32 %v1157, %v1165
    %v1168 = vtanh.pop %v1167
    %1170 = vrot.lane.b32.xlu0 %v1168, 64
    %v1171 = vpop.permute.xlu0 %1170
    %v1173 = vmul.f32 %v1155, %v1171
    %1175 = vrot.lane.b32.xlu0 %v1173, 32
    %v1176 = vpop.permute.xlu0 %1175
    %1179 = vrot.lane.b32.xlu0 %v1076, 64
    %v1180 = vpop.permute.xlu0 %1179
    %v1182 = vsel %vm125, %v1176, %v1180
    %v1184 = vsel %vm366, %v1182, 0
    %1186 = vmatprep.subr.mxu0 0.0
    %1187 = vmatpush1.msra.mxu0 %v91
    %1188 = vmatprep.subr.mxu0 0.0
    %1189 = vmatpush1.msra.mxu0 %v92
    %1190 = vmatprep.subr.mxu0 0.0
    %1191 = vmatpush1.msra.mxu0 %v93
    %1192 = vmatprep.subr.mxu0 0.0
    %1193 = vmatpush1.msra.mxu0 %v94
    %1194 = vmatprep.subr.mxu0 0.0
    %1195 = vmatpush1.msra.mxu0 %v95
    %1196 = vmatprep.subr.mxu0 0.0
    %1197 = vmatpush1.msra.mxu0 %v96
    %1198 = vmatprep.subr.mxu0 0.0
    %1199 = vmatpush1.msra.mxu0 %v97
    %1200 = vmatprep.subr.mxu0 0.0
    %1201 = vmatpush1.msra.mxu0 %v98
    %1202 = vmatprep.subr.mxu0 0.0
    %1203 = vmatpush1.msra.mxu0 0.0
    %1204 = vmatprep.subr.mxu0 0.0
    %1205 = vmatpush1.msra.mxu0 0.0
    %1206 = vmatprep.subr.mxu0 0.0
    %1207 = vmatpush1.msra.mxu0 0.0
    %1208 = vmatprep.subr.mxu0 0.0
    %1209 = vmatpush1.msra.mxu0 0.0
    %1210 = vmatprep.subr.mxu0 0.0
    %1211 = vmatpush1.msra.mxu0 0.0
    %1212 = vmatprep.subr.mxu0 0.0
    %1213 = vmatpush1.msra.mxu0 0.0
    %1214 = vmatprep.subr.mxu0 0.0
    %1215 = vmatpush1.msra.mxu0 0.0
    %1216 = vmatprep.subr.mxu0 0.0
    %1217 = vmatpush1.msra.mxu0 0.0
    %1218 = vmatprep.subr.mxu0 0.0
    %1219 = vmatpush1.msra.mxu0 0.0
    %1220 = vmatprep.subr.mxu0 0.0
    %1221 = vmatpush1.msra.mxu0 0.0
    %1222 = vmatprep.subr.mxu0 0.0
    %1223 = vmatpush1.msra.mxu0 0.0
    %1224 = vmatprep.subr.mxu0 0.0
    %1225 = vmatpush1.msra.mxu0 0.0
    %1226 = vmatprep.subr.mxu0 0.0
    %1227 = vmatpush1.msra.mxu0 0.0
    %1228 = vmatprep.subr.mxu0 0.0
    %1229 = vmatpush1.msra.mxu0 0.0
    %1230 = vmatprep.subr.mxu0 0.0
    %1231 = vmatpush1.msra.mxu0 0.0
    %1232 = vmatprep.subr.mxu0 0.0
    %1233 = vmatpush1.msra.mxu0 0.0
    %1234 = vmatprep.subr.mxu0 0.0
    %1235 = vmatpush1.msra.mxu0 0.0
    %1236 = vmatprep.subr.mxu0 0.0
    %1237 = vmatpush1.msra.mxu0 0.0
    %1238 = vmatprep.subr.mxu0 0.0
    %1239 = vmatpush1.msra.mxu0 0.0
    %1240 = vmatprep.subr.mxu0 0.0
    %1241 = vmatpush1.msra.mxu0 0.0
    %1242 = vmatprep.subr.mxu0 0.0
    %1243 = vmatpush1.msra.mxu0 0.0
    %1244 = vmatprep.subr.mxu0 0.0
    %1245 = vmatpush1.msra.mxu0 0.0
    %1246 = vmatprep.subr.mxu0 0.0
    %1247 = vmatpush1.msra.mxu0 0.0
    %1248 = vmatprep.subr.mxu0 0.0
    %1249 = vmatpush1.msra.mxu0 0.0
    %1250 = vmatprep.mubr.f32.mxu0 0.0
    %1251 = vmatmul.mubr.f32.gmra.mrb[0].mxu0 %v1184
    %v1252 = vpop.f32.mrb[0].mxu0
    %v1253 = vadd.f32 %v104, %v1252
    %v1254 = vpop.f32.mrb[0].mxu0
    %1255 = vdwg.mxu0
    %v1256 = vxor.u32 %v1253, 2147483648
    %v1257 = vmul.f32 %v1256, 1.442695
    %v1258 = vpow.pop %v1257
    %v1259 = vadd.f32 %v1258, 1.0
    %v1260 = vrcp.pop %v1259
    %v1261 = vmul.f32 1.0, %v1260
    %v1262 = vtanh.pop %v1253
    %v1263 = vmul.f32 %v1261, %v1070
    %1265 = vrot.lane.b32.xlu0 %v1262, 64
    %v1266 = vpop.permute.xlu0 %1265
    %v1268 = vmul.f32 %v1261, %v1266
    %1270 = vrot.lane.b32.xlu0 %v1268, 32
    %v1271 = vpop.permute.xlu0 %1270
    %v1273 = vadd.f32 %v1263, %v1271
    %v1274 = vtanh.pop %v1273
    %1276 = vrot.lane.b32.xlu0 %v1274, 64
    %v1277 = vpop.permute.xlu0 %1276
    %v1279 = vmul.f32 %v1261, %v1277
    %v1280 = vsel %vm125, %v1176, 0
    %1282 = vmatprep.subr.mxu0 0.0
    %1283 = vmatpush1.msra.mxu0 %v87
    %1284 = vmatprep.subr.mxu0 0.0
    %1285 = vmatpush1.msra.mxu0 %v88
    %1286 = vmatprep.subr.mxu0 0.0
    %1287 = vmatpush1.msra.mxu0 %v89
    %1288 = vmatprep.subr.mxu0 0.0
    %1289 = vmatpush1.msra.mxu0 %v90
    %1290 = vmatprep.subr.mxu0 0.0
    %1291 = vmatpush1.msra.mxu0 0.0
    %1292 = vmatprep.subr.mxu0 0.0
    %1293 = vmatpush1.msra.mxu0 0.0
    %1294 = vmatprep.subr.mxu0 0.0
    %1295 = vmatpush1.msra.mxu0 0.0
    %1296 = vmatprep.subr.mxu0 0.0
    %1297 = vmatpush1.msra.mxu0 0.0
    %1298 = vmatprep.subr.mxu0 0.0
    %1299 = vmatpush1.msra.mxu0 0.0
    %1300 = vmatprep.subr.mxu0 0.0
    %1301 = vmatpush1.msra.mxu0 0.0
    %1302 = vmatprep.subr.mxu0 0.0
    %1303 = vmatpush1.msra.mxu0 0.0
    %1304 = vmatprep.subr.mxu0 0.0
    %1305 = vmatpush1.msra.mxu0 0.0
    %1306 = vmatprep.subr.mxu0 0.0
    %1307 = vmatpush1.msra.mxu0 0.0
    %1308 = vmatprep.subr.mxu0 0.0
    %1309 = vmatpush1.msra.mxu0 0.0
    %1310 = vmatprep.subr.mxu0 0.0
    %1311 = vmatpush1.msra.mxu0 0.0
    %1312 = vmatprep.subr.mxu0 0.0
    %1313 = vmatpush1.msra.mxu0 0.0
    %1314 = vmatprep.subr.mxu0 0.0
    %1315 = vmatpush1.msra.mxu0 0.0
    %1316 = vmatprep.subr.mxu0 0.0
    %1317 = vmatpush1.msra.mxu0 0.0
    %1318 = vmatprep.subr.mxu0 0.0
    %1319 = vmatpush1.msra.mxu0 0.0
    %1320 = vmatprep.subr.mxu0 0.0
    %1321 = vmatpush1.msra.mxu0 0.0
    %1322 = vmatprep.subr.mxu0 0.0
    %1323 = vmatpush1.msra.mxu0 0.0
    %1324 = vmatprep.subr.mxu0 0.0
    %1325 = vmatpush1.msra.mxu0 0.0
    %1326 = vmatprep.subr.mxu0 0.0
    %1327 = vmatpush1.msra.mxu0 0.0
    %1328 = vmatprep.subr.mxu0 0.0
    %1329 = vmatpush1.msra.mxu0 0.0
    %1330 = vmatprep.subr.mxu0 0.0
    %1331 = vmatpush1.msra.mxu0 0.0
    %1332 = vmatprep.subr.mxu0 0.0
    %1333 = vmatpush1.msra.mxu0 0.0
    %1334 = vmatprep.subr.mxu0 0.0
    %1335 = vmatpush1.msra.mxu0 0.0
    %1336 = vmatprep.subr.mxu0 0.0
    %1337 = vmatpush1.msra.mxu0 0.0
    %1338 = vmatprep.subr.mxu0 0.0
    %1339 = vmatpush1.msra.mxu0 0.0
    %1340 = vmatprep.subr.mxu0 0.0
    %1341 = vmatpush1.msra.mxu0 0.0
    %1342 = vmatprep.subr.mxu0 0.0
    %1343 = vmatpush1.msra.mxu0 0.0
    %1344 = vmatprep.subr.mxu0 0.0
    %1345 = vmatpush1.msra.mxu0 0.0
    %1346 = vmatprep.mubr.f32.mxu0 0.0
    %1347 = vmatmul.mubr.f32.gmra.mrb[0].mxu0 %v1280
    %v1348 = vpop.f32.mrb[0].mxu0
    %v1349 = vadd.f32 0.0, %v1348
    %v1350 = vpop.f32.mrb[0].mxu0
    %1351 = vdwg.mxu0
    %v1352 = vadd.f32 %v242, %v1349
    %v1353 = vxor.u32 %v1352, 2147483648
    %v1354 = vmul.f32 %v1353, 1.442695
    %v1355 = vpow.pop %v1354
    %v1356 = vadd.f32 %v1355, 1.0
    %v1357 = vrcp.pop %v1356
    %v1358 = vmul.f32 1.0, %v1357
    %v1359 = vtanh.pop %v1352
    %v1360 = vmul.f32 %v1358, %v1167
    %1362 = vrot.lane.b32.xlu0 %v1359, 64
    %v1363 = vpop.permute.xlu0 %1362
    %v1365 = vmul.f32 %v1358, %v1363
    %1367 = vrot.lane.b32.xlu0 %v1365, 32
    %v1368 = vpop.permute.xlu0 %1367
    %v1370 = vadd.f32 %v1360, %v1368
    %v1371 = vtanh.pop %v1370
    %1373 = vrot.lane.b32.xlu0 %v1371, 64
    %v1374 = vpop.permute.xlu0 %1373
    %v1376 = vmul.f32 %v1358, %v1374
    %1378 = vrot.lane.b32.xlu0 %v1376, 32
    %v1379 = vpop.permute.xlu0 %1378
    %1382 = vrot.lane.b32.xlu0 %v1279, 64
    %v1383 = vpop.permute.xlu0 %1382
    %v1385 = vsel %vm125, %v1379, %v1383
    %v1387 = vsel %vm366, %v1385, 0
    %1389 = vmatprep.subr.mxu0 0.0
    %1390 = vmatpush1.msra.mxu0 %v91
    %1391 = vmatprep.subr.mxu0 0.0
    %1392 = vmatpush1.msra.mxu0 %v92
    %1393 = vmatprep.subr.mxu0 0.0
    %1394 = vmatpush1.msra.mxu0 %v93
    %1395 = vmatprep.subr.mxu0 0.0
    %1396 = vmatpush1.msra.mxu0 %v94
    %1397 = vmatprep.subr.mxu0 0.0
    %1398 = vmatpush1.msra.mxu0 %v95
    %1399 = vmatprep.subr.mxu0 0.0
    %1400 = vmatpush1.msra.mxu0 %v96
    %1401 = vmatprep.subr.mxu0 0.0
    %1402 = vmatpush1.msra.mxu0 %v97
    %1403 = vmatprep.subr.mxu0 0.0
    %1404 = vmatpush1.msra.mxu0 %v98
    %1405 = vmatprep.subr.mxu0 0.0
    %1406 = vmatpush1.msra.mxu0 0.0
    %1407 = vmatprep.subr.mxu0 0.0
    %1408 = vmatpush1.msra.mxu0 0.0
    %1409 = vmatprep.subr.mxu0 0.0
    %1410 = vmatpush1.msra.mxu0 0.0
    %1411 = vmatprep.subr.mxu0 0.0
    %1412 = vmatpush1.msra.mxu0 0.0
    %1413 = vmatprep.subr.mxu0 0.0
    %1414 = vmatpush1.msra.mxu0 0.0
    %1415 = vmatprep.subr.mxu0 0.0
    %1416 = vmatpush1.msra.mxu0 0.0
    %1417 = vmatprep.subr.mxu0 0.0
    %1418 = vmatpush1.msra.mxu0 0.0
    %1419 = vmatprep.subr.mxu0 0.0
    %1420 = vmatpush1.msra.mxu0 0.0
    %1421 = vmatprep.subr.mxu0 0.0
    %1422 = vmatpush1.msra.mxu0 0.0
    %1423 = vmatprep.subr.mxu0 0.0
    %1424 = vmatpush1.msra.mxu0 0.0
    %1425 = vmatprep.subr.mxu0 0.0
    %1426 = vmatpush1.msra.mxu0 0.0
    %1427 = vmatprep.subr.mxu0 0.0
    %1428 = vmatpush1.msra.mxu0 0.0
    %1429 = vmatprep.subr.mxu0 0.0
    %1430 = vmatpush1.msra.mxu0 0.0
    %1431 = vmatprep.subr.mxu0 0.0
    %1432 = vmatpush1.msra.mxu0 0.0
    %1433 = vmatprep.subr.mxu0 0.0
    %1434 = vmatpush1.msra.mxu0 0.0
    %1435 = vmatprep.subr.mxu0 0.0
    %1436 = vmatpush1.msra.mxu0 0.0
    %1437 = vmatprep.subr.mxu0 0.0
    %1438 = vmatpush1.msra.mxu0 0.0
    %1439 = vmatprep.subr.mxu0 0.0
    %1440 = vmatpush1.msra.mxu0 0.0
    %1441 = vmatprep.subr.mxu0 0.0
    %1442 = vmatpush1.msra.mxu0 0.0
    %1443 = vmatprep.subr.mxu0 0.0
    %1444 = vmatpush1.msra.mxu0 0.0
    %1445 = vmatprep.subr.mxu0 0.0
    %1446 = vmatpush1.msra.mxu0 0.0
    %1447 = vmatprep.subr.mxu0 0.0
    %1448 = vmatpush1.msra.mxu0 0.0
    %1449 = vmatprep.subr.mxu0 0.0
    %1450 = vmatpush1.msra.mxu0 0.0
    %1451 = vmatprep.subr.mxu0 0.0
    %1452 = vmatpush1.msra.mxu0 0.0
    %1453 = vmatprep.mubr.f32.mxu0 0.0
    %1454 = vmatmul.mubr.f32.gmra.mrb[0].mxu0 %v1387
    %v1455 = vpop.f32.mrb[0].mxu0
    %v1456 = vadd.f32 %v104, %v1455
    %v1457 = vpop.f32.mrb[0].mxu0
    %1458 = vdwg.mxu0
    %v1459 = vxor.u32 %v1456, 2147483648
    %v1460 = vmul.f32 %v1459, 1.442695
    %v1461 = vpow.pop %v1460
    %v1462 = vadd.f32 %v1461, 1.0
    %v1463 = vrcp.pop %v1462
    %v1464 = vmul.f32 1.0, %v1463
    %v1465 = vtanh.pop %v1456
    %v1466 = vmul.f32 %v1464, %v1273
    %1468 = vrot.lane.b32.xlu0 %v1465, 64
    %v1469 = vpop.permute.xlu0 %1468
    %v1471 = vmul.f32 %v1464, %v1469
    %1473 = vrot.lane.b32.xlu0 %v1471, 32
    %v1474 = vpop.permute.xlu0 %1473
    %v1476 = vadd.f32 %v1466, %v1474
    %v1477 = vtanh.pop %v1476
    %1479 = vrot.lane.b32.xlu0 %v1477, 64
    %v1480 = vpop.permute.xlu0 %1479
    %v1482 = vmul.f32 %v1464, %v1480
    %v1483 = vsel %vm125, %v1379, 0
    %1485 = vmatprep.subr.mxu0 0.0
    %1486 = vmatpush1.msra.mxu0 %v87
    %1487 = vmatprep.subr.mxu0 0.0
    %1488 = vmatpush1.msra.mxu0 %v88
    %1489 = vmatprep.subr.mxu0 0.0
    %1490 = vmatpush1.msra.mxu0 %v89
    %1491 = vmatprep.subr.mxu0 0.0
    %1492 = vmatpush1.msra.mxu0 %v90
    %1493 = vmatprep.subr.mxu0 0.0
    %1494 = vmatpush1.msra.mxu0 0.0
    %1495 = vmatprep.subr.mxu0 0.0
    %1496 = vmatpush1.msra.mxu0 0.0
    %1497 = vmatprep.subr.mxu0 0.0
    %1498 = vmatpush1.msra.mxu0 0.0
    %1499 = vmatprep.subr.mxu0 0.0
    %1500 = vmatpush1.msra.mxu0 0.0
    %1501 = vmatprep.subr.mxu0 0.0
    %1502 = vmatpush1.msra.mxu0 0.0
    %1503 = vmatprep.subr.mxu0 0.0
    %1504 = vmatpush1.msra.mxu0 0.0
    %1505 = vmatprep.subr.mxu0 0.0
    %1506 = vmatpush1.msra.mxu0 0.0
    %1507 = vmatprep.subr.mxu0 0.0
    %1508 = vmatpush1.msra.mxu0 0.0
    %1509 = vmatprep.subr.mxu0 0.0
    %1510 = vmatpush1.msra.mxu0 0.0
    %1511 = vmatprep.subr.mxu0 0.0
    %1512 = vmatpush1.msra.mxu0 0.0
    %1513 = vmatprep.subr.mxu0 0.0
    %1514 = vmatpush1.msra.mxu0 0.0
    %1515 = vmatprep.subr.mxu0 0.0
    %1516 = vmatpush1.msra.mxu0 0.0
    %1517 = vmatprep.subr.mxu0 0.0
    %1518 = vmatpush1.msra.mxu0 0.0
    %1519 = vmatprep.subr.mxu0 0.0
    %1520 = vmatpush1.msra.mxu0 0.0
    %1521 = vmatprep.subr.mxu0 0.0
    %1522 = vmatpush1.msra.mxu0 0.0
    %1523 = vmatprep.subr.mxu0 0.0
    %1524 = vmatpush1.msra.mxu0 0.0
    %1525 = vmatprep.subr.mxu0 0.0
    %1526 = vmatpush1.msra.mxu0 0.0
    %1527 = vmatprep.subr.mxu0 0.0
    %1528 = vmatpush1.msra.mxu0 0.0
    %1529 = vmatprep.subr.mxu0 0.0
    %1530 = vmatpush1.msra.mxu0 0.0
    %1531 = vmatprep.subr.mxu0 0.0
    %1532 = vmatpush1.msra.mxu0 0.0
    %1533 = vmatprep.subr.mxu0 0.0
    %1534 = vmatpush1.msra.mxu0 0.0
    %1535 = vmatprep.subr.mxu0 0.0
    %1536 = vmatpush1.msra.mxu0 0.0
    %1537 = vmatprep.subr.mxu0 0.0
    %1538 = vmatpush1.msra.mxu0 0.0
    %1539 = vmatprep.subr.mxu0 0.0
    %1540 = vmatpush1.msra.mxu0 0.0
    %1541 = vmatprep.subr.mxu0 0.0
    %1542 = vmatpush1.msra.mxu0 0.0
    %1543 = vmatprep.subr.mxu0 0.0
    %1544 = vmatpush1.msra.mxu0 0.0
    %1545 = vmatprep.subr.mxu0 0.0
    %1546 = vmatpush1.msra.mxu0 0.0
    %1547 = vmatprep.subr.mxu0 0.0
    %1548 = vmatpush1.msra.mxu0 0.0
    %1549 = vmatprep.mubr.f32.mxu0 0.0
    %1550 = vmatmul.mubr.f32.gmra.mrb[0].mxu0 %v1483
    %v1551 = vpop.f32.mrb[0].mxu0
    %v1552 = vadd.f32 0.0, %v1551
    %v1553 = vpop.f32.mrb[0].mxu0
    %1554 = vdwg.mxu0
    %v1555 = vadd.f32 %v247, %v1552
    %v1556 = vxor.u32 %v1555, 2147483648
    %v1557 = vmul.f32 %v1556, 1.442695
    %v1558 = vpow.pop %v1557
    %v1559 = vadd.f32 %v1558, 1.0
    %v1560 = vrcp.pop %v1559
    %v1561 = vmul.f32 1.0, %v1560
    %v1562 = vtanh.pop %v1555
    %v1563 = vmul.f32 %v1561, %v1370
    %1565 = vrot.lane.b32.xlu0 %v1562, 64
    %v1566 = vpop.permute.xlu0 %1565
    %v1568 = vmul.f32 %v1561, %v1566
    %1570 = vrot.lane.b32.xlu0 %v1568, 32
    %v1571 = vpop.permute.xlu0 %1570
    %v1573 = vadd.f32 %v1563, %v1571
    %v1574 = vtanh.pop %v1573
    %1576 = vrot.lane.b32.xlu0 %v1574, 64
    %v1577 = vpop.permute.xlu0 %1576
    %v1579 = vmul.f32 %v1561, %v1577
    %1581 = vrot.lane.b32.xlu0 %v1579, 32
    %v1582 = vpop.permute.xlu0 %1581
    %1585 = vrot.lane.b32.xlu0 %v1482, 64
    %v1586 = vpop.permute.xlu0 %1585
    %v1588 = vsel %vm125, %v1582, %v1586
    %v1590 = vsel %vm366, %v1588, 0
    %1592 = vmatprep.subr.mxu0 0.0
    %1593 = vmatpush1.msra.mxu0 %v91
    %1594 = vmatprep.subr.mxu0 0.0
    %1595 = vmatpush1.msra.mxu0 %v92
    %1596 = vmatprep.subr.mxu0 0.0
    %1597 = vmatpush1.msra.mxu0 %v93
    %1598 = vmatprep.subr.mxu0 0.0
    %1599 = vmatpush1.msra.mxu0 %v94
    %1600 = vmatprep.subr.mxu0 0.0
    %1601 = vmatpush1.msra.mxu0 %v95
    %1602 = vmatprep.subr.mxu0 0.0
    %1603 = vmatpush1.msra.mxu0 %v96
    %1604 = vmatprep.subr.mxu0 0.0
    %1605 = vmatpush1.msra.mxu0 %v97
    %1606 = vmatprep.subr.mxu0 0.0
    %1607 = vmatpush1.msra.mxu0 %v98
    %1608 = vmatprep.subr.mxu0 0.0
    %1609 = vmatpush1.msra.mxu0 0.0
    %1610 = vmatprep.subr.mxu0 0.0
    %1611 = vmatpush1.msra.mxu0 0.0
    %1612 = vmatprep.subr.mxu0 0.0
    %1613 = vmatpush1.msra.mxu0 0.0
    %1614 = vmatprep.subr.mxu0 0.0
    %1615 = vmatpush1.msra.mxu0 0.0
    %1616 = vmatprep.subr.mxu0 0.0
    %1617 = vmatpush1.msra.mxu0 0.0
    %1618 = vmatprep.subr.mxu0 0.0
    %1619 = vmatpush1.msra.mxu0 0.0
    %1620 = vmatprep.subr.mxu0 0.0
    %1621 = vmatpush1.msra.mxu0 0.0
    %1622 = vmatprep.subr.mxu0 0.0
    %1623 = vmatpush1.msra.mxu0 0.0
    %1624 = vmatprep.subr.mxu0 0.0
    %1625 = vmatpush1.msra.mxu0 0.0
    %1626 = vmatprep.subr.mxu0 0.0
    %1627 = vmatpush1.msra.mxu0 0.0
    %1628 = vmatprep.subr.mxu0 0.0
    %1629 = vmatpush1.msra.mxu0 0.0
    %1630 = vmatprep.subr.mxu0 0.0
    %1631 = vmatpush1.msra.mxu0 0.0
    %1632 = vmatprep.subr.mxu0 0.0
    %1633 = vmatpush1.msra.mxu0 0.0
    %1634 = vmatprep.subr.mxu0 0.0
    %1635 = vmatpush1.msra.mxu0 0.0
    %1636 = vmatprep.subr.mxu0 0.0
    %1637 = vmatpush1.msra.mxu0 0.0
    %1638 = vmatprep.subr.mxu0 0.0
    %1639 = vmatpush1.msra.mxu0 0.0
    %1640 = vmatprep.subr.mxu0 0.0
    %1641 = vmatpush1.msra.mxu0 0.0
    %1642 = vmatprep.subr.mxu0 0.0
    %1643 = vmatpush1.msra.mxu0 0.0
    %1644 = vmatprep.subr.mxu0 0.0
    %1645 = vmatpush1.msra.mxu0 0.0
    %1646 = vmatprep.subr.mxu0 0.0
    %1647 = vmatpush1.msra.mxu0 0.0
    %1648 = vmatprep.subr.mxu0 0.0
    %1649 = vmatpush1.msra.mxu0 0.0
    %1650 = vmatprep.subr.mxu0 0.0
    %1651 = vmatpush1.msra.mxu0 0.0
    %1652 = vmatprep.subr.mxu0 0.0
    %1653 = vmatpush1.msra.mxu0 0.0
    %1654 = vmatprep.subr.mxu0 0.0
    %1655 = vmatpush1.msra.mxu0 0.0
    %1656 = vmatprep.mubr.f32.mxu0 0.0
    %1657 = vmatmul.mubr.f32.gmra.mrb[0].mxu0 %v1590
    %v1658 = vpop.f32.mrb[0].mxu0
    %v1659 = vadd.f32 %v104, %v1658
    %v1660 = vpop.f32.mrb[0].mxu0
    %1661 = vdwg.mxu0
    %v1662 = vxor.u32 %v1659, 2147483648
    %v1663 = vmul.f32 %v1662, 1.442695
    %v1664 = vpow.pop %v1663
    %v1665 = vadd.f32 %v1664, 1.0
    %v1666 = vrcp.pop %v1665
    %v1667 = vmul.f32 1.0, %v1666
    %v1668 = vtanh.pop %v1659
    %v1669 = vmul.f32 %v1667, %v1476
    %1671 = vrot.lane.b32.xlu0 %v1668, 64
    %v1672 = vpop.permute.xlu0 %1671
    %v1674 = vmul.f32 %v1667, %v1672
    %1676 = vrot.lane.b32.xlu0 %v1674, 32
    %v1677 = vpop.permute.xlu0 %1676
    %v1679 = vadd.f32 %v1669, %v1677
    %v1680 = vtanh.pop %v1679
    %1682 = vrot.lane.b32.xlu0 %v1680, 64
    %v1683 = vpop.permute.xlu0 %1682
    %v1685 = vmul.f32 %v1667, %v1683
    %v1686 = vsel %vm125, %v1582, 0
    %1688 = vmatprep.subr.mxu0 0.0
    %1689 = vmatpush1.msra.mxu0 %v87
    %1690 = vmatprep.subr.mxu0 0.0
    %1691 = vmatpush1.msra.mxu0 %v88
    %1692 = vmatprep.subr.mxu0 0.0
    %1693 = vmatpush1.msra.mxu0 %v89
    %1694 = vmatprep.subr.mxu0 0.0
    %1695 = vmatpush1.msra.mxu0 %v90
    %1696 = vmatprep.subr.mxu0 0.0
    %1697 = vmatpush1.msra.mxu0 0.0
    %1698 = vmatprep.subr.mxu0 0.0
    %1699 = vmatpush1.msra.mxu0 0.0
    %1700 = vmatprep.subr.mxu0 0.0
    %1701 = vmatpush1.msra.mxu0 0.0
    %1702 = vmatprep.subr.mxu0 0.0
    %1703 = vmatpush1.msra.mxu0 0.0
    %1704 = vmatprep.subr.mxu0 0.0
    %1705 = vmatpush1.msra.mxu0 0.0
    %1706 = vmatprep.subr.mxu0 0.0
    %1707 = vmatpush1.msra.mxu0 0.0
    %1708 = vmatprep.subr.mxu0 0.0
    %1709 = vmatpush1.msra.mxu0 0.0
    %1710 = vmatprep.subr.mxu0 0.0
    %1711 = vmatpush1.msra.mxu0 0.0
    %1712 = vmatprep.subr.mxu0 0.0
    %1713 = vmatpush1.msra.mxu0 0.0
    %1714 = vmatprep.subr.mxu0 0.0
    %1715 = vmatpush1.msra.mxu0 0.0
    %1716 = vmatprep.subr.mxu0 0.0
    %1717 = vmatpush1.msra.mxu0 0.0
    %1718 = vmatprep.subr.mxu0 0.0
    %1719 = vmatpush1.msra.mxu0 0.0
    %1720 = vmatprep.subr.mxu0 0.0
    %1721 = vmatpush1.msra.mxu0 0.0
    %1722 = vmatprep.subr.mxu0 0.0
    %1723 = vmatpush1.msra.mxu0 0.0
    %1724 = vmatprep.subr.mxu0 0.0
    %1725 = vmatpush1.msra.mxu0 0.0
    %1726 = vmatprep.subr.mxu0 0.0
    %1727 = vmatpush1.msra.mxu0 0.0
    %1728 = vmatprep.subr.mxu0 0.0
    %1729 = vmatpush1.msra.mxu0 0.0
    %1730 = vmatprep.subr.mxu0 0.0
    %1731 = vmatpush1.msra.mxu0 0.0
    %1732 = vmatprep.subr.mxu0 0.0
    %1733 = vmatpush1.msra.mxu0 0.0
    %1734 = vmatprep.subr.mxu0 0.0
    %1735 = vmatpush1.msra.mxu0 0.0
    %1736 = vmatprep.subr.mxu0 0.0
    %1737 = vmatpush1.msra.mxu0 0.0
    %1738 = vmatprep.subr.mxu0 0.0
    %1739 = vmatpush1.msra.mxu0 0.0
    %1740 = vmatprep.subr.mxu0 0.0
    %1741 = vmatpush1.msra.mxu0 0.0
    %1742 = vmatprep.subr.mxu0 0.0
    %1743 = vmatpush1.msra.mxu0 0.0
    %1744 = vmatprep.subr.mxu0 0.0
    %1745 = vmatpush1.msra.mxu0 0.0
    %1746 = vmatprep.subr.mxu0 0.0
    %1747 = vmatpush1.msra.mxu0 0.0
    %1748 = vmatprep.subr.mxu0 0.0
    %1749 = vmatpush1.msra.mxu0 0.0
    %1750 = vmatprep.subr.mxu0 0.0
    %1751 = vmatpush1.msra.mxu0 0.0
    %1752 = vmatprep.mubr.f32.mxu0 0.0
    %1753 = vmatmul.mubr.f32.gmra.mrb[0].mxu0 %v1686
    %v1754 = vpop.f32.mrb[0].mxu0
    %v1755 = vadd.f32 0.0, %v1754
    %v1756 = vpop.f32.mrb[0].mxu0
    %1757 = vdwg.mxu0
    %v1758 = vadd.f32 %v252, %v1755
    %v1759 = vxor.u32 %v1758, 2147483648
    %v1760 = vmul.f32 %v1759, 1.442695
    %v1761 = vpow.pop %v1760
    %v1762 = vadd.f32 %v1761, 1.0
    %v1763 = vrcp.pop %v1762
    %v1764 = vmul.f32 1.0, %v1763
    %v1765 = vtanh.pop %v1758
    %v1766 = vmul.f32 %v1764, %v1573
    %1768 = vrot.lane.b32.xlu0 %v1765, 64
    %v1769 = vpop.permute.xlu0 %1768
    %v1771 = vmul.f32 %v1764, %v1769
    %1773 = vrot.lane.b32.xlu0 %v1771, 32
    %v1774 = vpop.permute.xlu0 %1773
    %v1776 = vadd.f32 %v1766, %v1774
    %v1777 = vtanh.pop %v1776
    %1779 = vrot.lane.b32.xlu0 %v1777, 64
    %v1780 = vpop.permute.xlu0 %1779
    %v1782 = vmul.f32 %v1764, %v1780
    %1784 = vrot.lane.b32.xlu0 %v1782, 32
    %v1785 = vpop.permute.xlu0 %1784
    %1788 = vrot.lane.b32.xlu0 %v1685, 64
    %v1789 = vpop.permute.xlu0 %1788
    %v1791 = vsel %vm125, %v1785, %v1789
    %v1793 = vsel %vm366, %v1791, 0
    %1795 = vmatprep.subr.mxu0 0.0
    %1796 = vmatpush1.msra.mxu0 %v91
    %1797 = vmatprep.subr.mxu0 0.0
    %1798 = vmatpush1.msra.mxu0 %v92
    %1799 = vmatprep.subr.mxu0 0.0
    %1800 = vmatpush1.msra.mxu0 %v93
    %1801 = vmatprep.subr.mxu0 0.0
    %1802 = vmatpush1.msra.mxu0 %v94
    %1803 = vmatprep.subr.mxu0 0.0
    %1804 = vmatpush1.msra.mxu0 %v95
    %1805 = vmatprep.subr.mxu0 0.0
    %1806 = vmatpush1.msra.mxu0 %v96
    %1807 = vmatprep.subr.mxu0 0.0
    %1808 = vmatpush1.msra.mxu0 %v97
    %1809 = vmatprep.subr.mxu0 0.0
    %1810 = vmatpush1.msra.mxu0 %v98
    %1811 = vmatprep.subr.mxu0 0.0
    %1812 = vmatpush1.msra.mxu0 0.0
    %1813 = vmatprep.subr.mxu0 0.0
    %1814 = vmatpush1.msra.mxu0 0.0
    %1815 = vmatprep.subr.mxu0 0.0
    %1816 = vmatpush1.msra.mxu0 0.0
    %1817 = vmatprep.subr.mxu0 0.0
    %1818 = vmatpush1.msra.mxu0 0.0
    %1819 = vmatprep.subr.mxu0 0.0
    %1820 = vmatpush1.msra.mxu0 0.0
    %1821 = vmatprep.subr.mxu0 0.0
    %1822 = vmatpush1.msra.mxu0 0.0
    %1823 = vmatprep.subr.mxu0 0.0
    %1824 = vmatpush1.msra.mxu0 0.0
    %1825 = vmatprep.subr.mxu0 0.0
    %1826 = vmatpush1.msra.mxu0 0.0
    %1827 = vmatprep.subr.mxu0 0.0
    %1828 = vmatpush1.msra.mxu0 0.0
    %1829 = vmatprep.subr.mxu0 0.0
    %1830 = vmatpush1.msra.mxu0 0.0
    %1831 = vmatprep.subr.mxu0 0.0
    %1832 = vmatpush1.msra.mxu0 0.0
    %1833 = vmatprep.subr.mxu0 0.0
    %1834 = vmatpush1.msra.mxu0 0.0
    %1835 = vmatprep.subr.mxu0 0.0
    %1836 = vmatpush1.msra.mxu0 0.0
    %1837 = vmatprep.subr.mxu0 0.0
    %1838 = vmatpush1.msra.mxu0 0.0
    %1839 = vmatprep.subr.mxu0 0.0
    %1840 = vmatpush1.msra.mxu0 0.0
    %1841 = vmatprep.subr.mxu0 0.0
    %1842 = vmatpush1.msra.mxu0 0.0
    %1843 = vmatprep.subr.mxu0 0.0
    %1844 = vmatpush1.msra.mxu0 0.0
    %1845 = vmatprep.subr.mxu0 0.0
    %1846 = vmatpush1.msra.mxu0 0.0
    %1847 = vmatprep.subr.mxu0 0.0
    %1848 = vmatpush1.msra.mxu0 0.0
    %1849 = vmatprep.subr.mxu0 0.0
    %1850 = vmatpush1.msra.mxu0 0.0
    %1851 = vmatprep.subr.mxu0 0.0
    %1852 = vmatpush1.msra.mxu0 0.0
    %1853 = vmatprep.subr.mxu0 0.0
    %1854 = vmatpush1.msra.mxu0 0.0
    %1855 = vmatprep.subr.mxu0 0.0
    %1856 = vmatpush1.msra.mxu0 0.0
    %1857 = vmatprep.subr.mxu0 0.0
    %1858 = vmatpush1.msra.mxu0 0.0
    %1859 = vmatprep.mubr.f32.mxu0 0.0
    %1860 = vmatmul.mubr.f32.gmra.mrb[0].mxu0 %v1793
    %v1861 = vpop.f32.mrb[0].mxu0
    %v1862 = vadd.f32 %v104, %v1861
    %v1863 = vpop.f32.mrb[0].mxu0
    %1864 = vdwg.mxu0
    %v1865 = vxor.u32 %v1862, 2147483648
    %v1866 = vmul.f32 %v1865, 1.442695
    %v1867 = vpow.pop %v1866
    %v1868 = vadd.f32 %v1867, 1.0
    %v1869 = vrcp.pop %v1868
    %v1870 = vmul.f32 1.0, %v1869
    %v1871 = vtanh.pop %v1862
    %v1872 = vmul.f32 %v1870, %v1679
    %1874 = vrot.lane.b32.xlu0 %v1871, 64
    %v1875 = vpop.permute.xlu0 %1874
    %v1877 = vmul.f32 %v1870, %v1875
    %1879 = vrot.lane.b32.xlu0 %v1877, 32
    %v1880 = vpop.permute.xlu0 %1879
    %v1882 = vadd.f32 %v1872, %v1880
    %v1883 = vtanh.pop %v1882
    %1885 = vrot.lane.b32.xlu0 %v1883, 64
    %v1886 = vpop.permute.xlu0 %1885
    %v1888 = vmul.f32 %v1870, %v1886
    %v1889 = vld [vmem:[#allocation7] sm:$0xff]
    %v1890 = vld [vmem:[#allocation7 + $0x8] sm:$0xff]
    %v1891 = vld [vmem:[#allocation7 + $0x10] sm:$0xff]
    %v1892 = vld [vmem:[#allocation7 + $0x18] sm:$0xff]
    %v1893 = vld [vmem:[%s9] sm:$0x1]
    %v1895 = vlaneseq
    %v1896 = vshrl.u32 %v1895, 7
    %v1897 = vsub.s32 0, %v1896
    %v1898 = vrot.slane %v1893, %v1897
    %1901 = vrot.lane.b32.xlu0 %v467, 32
    %v1902 = vpop.permute.xlu0 %1901
    %1903 = vrot.lane.b32.xlu0 %v670, 32
    %v1904 = vpop.permute.xlu0 %1903
    %1905 = vrot.lane.b32.xlu0 %v873, 32
    %v1906 = vpop.permute.xlu0 %1905
    %1907 = vrot.lane.b32.xlu0 %v1076, 32
    %v1908 = vpop.permute.xlu0 %1907
    %1909 = vrot.lane.b32.xlu0 %v1279, 32
    %v1910 = vpop.permute.xlu0 %1909
    %1911 = vrot.lane.b32.xlu0 %v1482, 32
    %v1912 = vpop.permute.xlu0 %1911
    %1913 = vrot.lane.b32.xlu0 %v1685, 32
    %v1914 = vpop.permute.xlu0 %1913
    %1915 = vrot.lane.b32.xlu0 %v1888, 32
    %v1916 = vpop.permute.xlu0 %1915
    %v1917 = vsel %vm125, %v1902, 0
    %v1919 = vsel %vm125, %v1904, 0
    %v1921 = vsel %vm125, %v1906, 0
    %v1923 = vsel %vm125, %v1908, 0
    %v1925 = vsel %vm125, %v1910, 0
    %v1927 = vsel %vm125, %v1912, 0
    %v1929 = vsel %vm125, %v1914, 0
    %v1931 = vsel %vm125, %v1916, 0
    %1933 = vmatprep.subr.mxu0 0.0
    %1934 = vmatpush1.msra.mxu0 %v1889
    %1935 = vmatprep.subr.mxu0 0.0
    %1936 = vmatpush1.msra.mxu0 %v1890
    %1937 = vmatprep.subr.mxu0 0.0
    %1938 = vmatpush1.msra.mxu0 %v1891
    %1939 = vmatprep.subr.mxu0 0.0
    %1940 = vmatpush1.msra.mxu0 %v1892
    %1941 = vmatprep.subr.mxu0 0.0
    %1942 = vmatpush1.msra.mxu0 0.0
    %1943 = vmatprep.subr.mxu0 0.0
    %1944 = vmatpush1.msra.mxu0 0.0
    %1945 = vmatprep.subr.mxu0 0.0
    %1946 = vmatpush1.msra.mxu0 0.0
    %1947 = vmatprep.subr.mxu0 0.0
    %1948 = vmatpush1.msra.mxu0 0.0
    %1949 = vmatprep.subr.mxu0 0.0
    %1950 = vmatpush1.msra.mxu0 0.0
    %1951 = vmatprep.subr.mxu0 0.0
    %1952 = vmatpush1.msra.mxu0 0.0
    %1953 = vmatprep.subr.mxu0 0.0
    %1954 = vmatpush1.msra.mxu0 0.0
    %1955 = vmatprep.subr.mxu0 0.0
    %1956 = vmatpush1.msra.mxu0 0.0
    %1957 = vmatprep.subr.mxu0 0.0
    %1958 = vmatpush1.msra.mxu0 0.0
    %1959 = vmatprep.subr.mxu0 0.0
    %1960 = vmatpush1.msra.mxu0 0.0
    %1961 = vmatprep.subr.mxu0 0.0
    %1962 = vmatpush1.msra.mxu0 0.0
    %1963 = vmatprep.subr.mxu0 0.0
    %1964 = vmatpush1.msra.mxu0 0.0
    %1965 = vmatprep.subr.mxu0 0.0
    %1966 = vmatpush1.msra.mxu0 0.0
    %1967 = vmatprep.subr.mxu0 0.0
    %1968 = vmatpush1.msra.mxu0 0.0
    %1969 = vmatprep.subr.mxu0 0.0
    %1970 = vmatpush1.msra.mxu0 0.0
    %1971 = vmatprep.subr.mxu0 0.0
    %1972 = vmatpush1.msra.mxu0 0.0
    %1973 = vmatprep.subr.mxu0 0.0
    %1974 = vmatpush1.msra.mxu0 0.0
    %1975 = vmatprep.subr.mxu0 0.0
    %1976 = vmatpush1.msra.mxu0 0.0
    %1977 = vmatprep.subr.mxu0 0.0
    %1978 = vmatpush1.msra.mxu0 0.0
    %1979 = vmatprep.subr.mxu0 0.0
    %1980 = vmatpush1.msra.mxu0 0.0
    %1981 = vmatprep.subr.mxu0 0.0
    %1982 = vmatpush1.msra.mxu0 0.0
    %1983 = vmatprep.subr.mxu0 0.0
    %1984 = vmatpush1.msra.mxu0 0.0
    %1985 = vmatprep.subr.mxu0 0.0
    %1986 = vmatpush1.msra.mxu0 0.0
    %1987 = vmatprep.subr.mxu0 0.0
    %1988 = vmatpush1.msra.mxu0 0.0
    %1989 = vmatprep.subr.mxu0 0.0
    %1990 = vmatpush1.msra.mxu0 0.0
    %1991 = vmatprep.subr.mxu0 0.0
    %1992 = vmatpush1.msra.mxu0 0.0
    %1993 = vmatprep.subr.mxu0 0.0
    %1994 = vmatpush1.msra.mxu0 0.0
    %1995 = vmatprep.subr.mxu0 0.0
    %1996 = vmatpush1.msra.mxu0 0.0
    %1997 = vmatprep.mubr.f32.mxu0 0.0
    %1998 = vmatmul.mubr.f32.gmra.mrb[0].mxu0 %v1917
    %v1999 = vpop.f32.mrb[0].mxu0
    %v2000 = vadd.f32 %v1898, %v1999
    %v2001 = vpop.f32.mrb[0].mxu0
    %2002 = vmatprep.mubr.f32.mxu0 0.0
    %2003 = vmatmul.mubr.f32.gmra.mrb[0].mxu0 %v1919
    %v2004 = vpop.f32.mrb[0].mxu0
    %v2005 = vadd.f32 %v1898, %v2004
    %v2006 = vpop.f32.mrb[0].mxu0
    %2007 = vmatprep.mubr.f32.mxu0 0.0
    %2008 = vmatmul.mubr.f32.gmra.mrb[0].mxu0 %v1921
    %v2009 = vpop.f32.mrb[0].mxu0
    %v2010 = vadd.f32 %v1898, %v2009
    %v2011 = vpop.f32.mrb[0].mxu0
    %2012 = vmatprep.mubr.f32.mxu0 0.0
    %2013 = vmatmul.mubr.f32.gmra.mrb[0].mxu0 %v1923
    %v2014 = vpop.f32.mrb[0].mxu0
    %v2015 = vadd.f32 %v1898, %v2014
    %v2016 = vpop.f32.mrb[0].mxu0
    %2017 = vmatprep.mubr.f32.mxu0 0.0
    %2018 = vmatmul.mubr.f32.gmra.mrb[0].mxu0 %v1925
    %v2019 = vpop.f32.mrb[0].mxu0
    %v2020 = vadd.f32 %v1898, %v2019
    %v2021 = vpop.f32.mrb[0].mxu0
    %2022 = vmatprep.mubr.f32.mxu0 0.0
    %2023 = vmatmul.mubr.f32.gmra.mrb[0].mxu0 %v1927
    %v2024 = vpop.f32.mrb[0].mxu0
    %v2025 = vadd.f32 %v1898, %v2024
    %v2026 = vpop.f32.mrb[0].mxu0
    %2027 = vmatprep.mubr.f32.mxu0 0.0
    %2028 = vmatmul.mubr.f32.gmra.mrb[0].mxu0 %v1929
    %v2029 = vpop.f32.mrb[0].mxu0
    %v2030 = vadd.f32 %v1898, %v2029
    %v2031 = vpop.f32.mrb[0].mxu0
    %2032 = vmatprep.mubr.f32.mxu0 0.0
    %2033 = vmatmul.mubr.f32.gmra.mrb[0].mxu0 %v1931
    %v2034 = vpop.f32.mrb[0].mxu0
    %v2035 = vadd.f32 %v1898, %v2034
    %v2036 = vpop.f32.mrb[0].mxu0
    %2037 = vdwg.mxu0
    %2038 = vst.msk [vmem:[%s10] sm:$0xff] %vm125, %v2000
    %2039 = vst.msk [vmem:[%s10 + $0x8] sm:$0xff] %vm125, %v2005
    %2040 = vst.msk [vmem:[%s10 + $0x10] sm:$0xff] %vm125, %v2010
    %2041 = vst.msk [vmem:[%s10 + $0x18] sm:$0xff] %vm125, %v2015
    %2042 = vst.msk [vmem:[%s10 + $0x20] sm:$0xff] %vm125, %v2020
    %2043 = vst.msk [vmem:[%s10 + $0x28] sm:$0xff] %vm125, %v2025
    %2044 = vst.msk [vmem:[%s10 + $0x30] sm:$0xff] %vm125, %v2030
    %2045 = vst.msk [vmem:[%s10 + $0x38] sm:$0xff] %vm125, %v2035
    %2046 = vst.msk [vmem:[#allocation8] sm:$0xff] %vm125, %v1785
    %s2048 = scalar_lea.vmem [#allocation8], 8
    %2049 = vst.msk [vmem:[%s2048] sm:$0xff] %vm125, %v1916
    %2051 = vrot.lane.b32.xlu0 %v1776, 96
    %v2052 = vpop.permute.xlu0 %2051
    %2054 = vst.msk [vmem:[#allocation9] sm:$0xff] %vm125, %v2052
    %2056 = vrot.lane.b32.xlu0 %v1882, 96
    %v2057 = vpop.permute.xlu0 %2056
    %s2059 = scalar_lea.vmem [#allocation9], 8
    %2060 = vst.msk [vmem:[%s2059] sm:$0xff] %vm125, %v2057
    // Predicated region
    $region54: #{tpu_custom_call.1} parent=1 // pred_check
      _
    $region55: #{tpu_custom_call.1} parent=1 // pred_check_branch
      %2062 = sbr.rel (0) target = $region57
    $region56: #{tpu_custom_call.1} parent=1 // pred_region
      _
    $region57: #{tpu_custom_call.1} parent=1 // pred_fallthru
      _
    // Predicated region
    $region58: #{tpu_custom_call.1} parent=1 // pred_check
      _
    $region59: #{tpu_custom_call.1} parent=1 // pred_check_branch
      %2064 = sbr.rel (0) target = $region61
    $region60: #{tpu_custom_call.1} parent=1 // pred_region
      %s2066 = ssub.s32 256, 256
      %2067 = vsyncadd [#allocation4], %s2066
      %s2068 = sshll.u32 [#allocation8], 4
      %s2069 = int_to_ptr.vmem [resolvable:$true] %s2068
      %2074 = dma.vmem_to_hbm [thread:$0]  %s2069, 256, %s11, [#allocation4], 128, 128, 8
    $region61: #{tpu_custom_call.1} parent=1 // pred_fallthru
      _
    // Predicated region
    $region62: #{tpu_custom_call.1} parent=1 // pred_check
      _
    $region63: #{tpu_custom_call.1} parent=1 // pred_check_branch
      %2076 = sbr.rel (0) target = $region65
    $region64: #{tpu_custom_call.1} parent=1 // pred_region
      %s2078 = ssub.s32 256, 256
      %2079 = vsyncadd [#allocation10], %s2078
      %s2080 = sshll.u32 [#allocation9], 4
      %s2081 = int_to_ptr.vmem [resolvable:$true] %s2080
      %2086 = dma.vmem_to_hbm [thread:$0]  %s2081, 256, %s12, [#allocation10], 128, 128, 8
    $region65: #{tpu_custom_call.1} parent=1 // pred_fallthru
      _
    // Predicated region
    $region66: #{tpu_custom_call.1} parent=1 // pred_check
      _
    $region67: #{tpu_custom_call.1} parent=1 // pred_check_branch
      %2088 = sbr.rel (0) target = $region69
    $region68: #{tpu_custom_call.1} parent=1 // pred_region
      _
    $region69: #{tpu_custom_call.1} parent=1 // pred_fallthru
      _
    // Predicated region
    $region70: #{tpu_custom_call.1} parent=1 // pred_check
      _
    $region71: #{tpu_custom_call.1} parent=1 // pred_check_branch
      %2090 = sbr.rel (0) target = $region73
    $region72: #{tpu_custom_call.1} parent=1 // pred_region
      %2091 = dma.done [#allocation4], 256
    $region73: #{tpu_custom_call.1} parent=1 // pred_fallthru
      _
    // Predicated region
    $region74: #{tpu_custom_call.1} parent=1 // pred_check
      _
    $region75: #{tpu_custom_call.1} parent=1 // pred_check_branch
      %2093 = sbr.rel (0) target = $region77
    $region76: #{tpu_custom_call.1} parent=1 // pred_region
      %2094 = dma.done [#allocation10], 256
    $region77: #{tpu_custom_call.1} parent=1 // pred_fallthru
      _
    %2095 = vsyncpa [#allocation3], 1
    %2096 = vsyncpa [#allocation6], 1
    %2097 = vsyncpa [#allocation4], 1
    %2098 = vsyncpa [#allocation10], 1

</llo_original>
